<compile_context>
chip_gen: v7x
topology: tpu7x:2x2x1
jax: 0.10.0
libtpu: 0.0.40
codegen_flags: <defaults>
</compile_context>

<pallas_src>
import jax
import jax.numpy as jnp
from jax.experimental import pallas as pl
from jax.experimental.pallas import tpu as pltpu


def gcn_graph_kernel(a_ref, h_ref, w1_ref, b1_ref, w2_ref, b2_ref,
                     w3_ref, b3_ref, out_ref):
    f32 = jnp.float32
    bf16 = jnp.bfloat16

    a = a_ref[...]                                   # (n_per, n_per) bf16
    h = h_ref[...]                                   # (n_per, F_pad) bf16

    # ---- GraphConv 1: project -> aggregate -> bias -> ReLU ----
    hw = jnp.dot(h, w1_ref[...], preferred_element_type=f32).astype(bf16)   # (n_per, H)
    h1 = jnp.dot(a, hw, preferred_element_type=f32) + b1_ref[...]           # f32
    h1 = jnp.maximum(h1, 0.0).astype(bf16)

    # ---- GraphConv 2 ----
    hw2 = jnp.dot(h1, w2_ref[...], preferred_element_type=f32).astype(bf16)
    h2 = jnp.dot(a, hw2, preferred_element_type=f32) + b2_ref[...]
    h2 = jnp.maximum(h2, 0.0)                                                # (n_per, H) f32

    # ---- mean_nodes readout: row mean over this graph's nodes ----
    hg = jnp.mean(h2, axis=0, keepdims=True)                                 # (1, H) f32

    # ---- fc1 ----
    out_ref[...] = (jnp.dot(hg.astype(bf16), w3_ref[...],
                            preferred_element_type=f32) + b3_ref[...])       # (1, C) f32


def gat_classifier_forward(a_blocks, h_blocks, w1, b1, w2, b2, w3, b3):
    """a_blocks: (G, n_per, n_per) bf16   normalized per-graph adjacency
       h_blocks: (G, n_per, F_pad) bf16   zero-padded node features
       w1: (F_pad, H) bf16, w2: (H, H) bf16, w3: (H, C) bf16
       b1, b2: (1, H) f32,  b3: (1, C) f32
       returns logits (G, C) f32"""
    G, n_per, _ = a_blocks.shape
    F_pad = h_blocks.shape[-1]
    Hd = w1.shape[1]
    C = w3.shape[1]

    const2 = lambda g: (0, 0)   # grid-resident weights: DMA'd once, reused per graph

    out = pl.pallas_call(
        gcn_graph_kernel,
        out_shape=jax.ShapeDtypeStruct((G, 1, C), jnp.float32),
        grid=(G,),
        in_specs=[
            pl.BlockSpec((None, n_per, n_per), lambda g: (g, 0, 0)),   # Ã block of graph g
            pl.BlockSpec((None, n_per, F_pad), lambda g: (g, 0, 0)),   # H0 tile of graph g
            pl.BlockSpec((F_pad, Hd), const2),                         # w1
            pl.BlockSpec((1, Hd), const2),                             # b1
            pl.BlockSpec((Hd, Hd), const2),                            # w2
            pl.BlockSpec((1, Hd), const2),                             # b2
            pl.BlockSpec((Hd, C), const2),                             # w3
            pl.BlockSpec((1, C), const2),                              # b3
        ],
        out_specs=pl.BlockSpec((None, 1, C), lambda g: (g, 0, 0)),
        compiler_params=pltpu.CompilerParams(
            dimension_semantics=("parallel",)),
    )(a_blocks, h_blocks, w1, b1, w2, b2, w3, b3)
    return out[:, 0, :]


def reference_forward(a_bf, h_bf, w1_bf, b1, w2_bf, b2, w3_bf, b3):
    """Plain-JAX reference mirroring the kernel's bf16-operand / f32-accum math."""
    f32 = jnp.float32
    bf16 = jnp.bfloat16
    hw = jnp.einsum('gnf,fh->gnh', h_bf, w1_bf,
                    preferred_element_type=f32).astype(bf16)
    h1 = jnp.einsum('gnm,gmh->gnh', a_bf, hw, preferred_element_type=f32) + b1
    h1 = jnp.maximum(h1, 0.0).astype(bf16)
    hw2 = jnp.einsum('gnh,hk->gnk', h1, w2_bf,
                     preferred_element_type=f32).astype(bf16)
    h2 = jnp.einsum('gnm,gmh->gnh', a_bf, hw2, preferred_element_type=f32) + b2
    h2 = jnp.maximum(h2, 0.0)
    hg = jnp.mean(h2, axis=1)                                   # (G, H)
    return jnp.einsum('gh,hc->gc', hg.astype(bf16), w3_bf,
                      preferred_element_type=f32) + b3


def build_graph_blocks(key, n_per, n_graphs):
    """Per-graph random adjacency blocks with self-loops (dgl.batch is
    block-diagonal, so the full N x N matrix is never materialized), with
    DGL GraphConv norm='both' normalization applied per block."""
    A = (jax.random.uniform(key, (n_graphs, n_per, n_per)) < 0.1).astype(jnp.float32)
    A = jnp.maximum(A, jnp.eye(n_per, dtype=jnp.float32)[None])     # self-loops
    deg_in = jnp.maximum(A.sum(axis=2), 1.0)                        # dst in-degree
    deg_out = jnp.maximum(A.sum(axis=1), 1.0)                       # src out-degree
    a_norm = A / jnp.sqrt(deg_in[:, :, None] * deg_out[:, None, :])
    return a_norm


if __name__ == "__main__":
    IN_FEAT, HIDDEN, N_CLASSES = 137, 256, 18        # module defaults
    F_PAD = 256                                      # lane-aligned K for layer 1
    N_PER, N_GRAPHS = 128, 4                         # nodes per graph, batched graphs

    key = jax.random.PRNGKey(0)
    key, k_adj, k_h, k1, k2, k3, kb1, kb2, kb3 = jax.random.split(key, 9)

    a_norm = build_graph_blocks(k_adj, N_PER, N_GRAPHS)            # (G, n, n) f32
    h0 = jax.random.normal(k_h, (N_GRAPHS, N_PER, IN_FEAT), jnp.float32)

    # parameters (Glorot-ish scaling), biases small-random so the bias path is exercised
    w1 = jax.random.normal(k1, (IN_FEAT, HIDDEN), jnp.float32) * (1.0 / IN_FEAT) ** 0.5
    b1 = jax.random.normal(kb1, (1, HIDDEN), jnp.float32) * 0.01
    w2 = jax.random.normal(k2, (HIDDEN, HIDDEN), jnp.float32) * (1.0 / HIDDEN) ** 0.5
    b2 = jax.random.normal(kb2, (1, HIDDEN), jnp.float32) * 0.01
    w3 = jax.random.normal(k3, (HIDDEN, N_CLASSES), jnp.float32) * (1.0 / HIDDEN) ** 0.5
    b3 = jax.random.normal(kb3, (1, N_CLASSES), jnp.float32) * 0.01

    # zero-pad the feature dim (137 -> 256) and w1's K rows to match
    h0_pad = jnp.pad(h0, ((0, 0), (0, 0), (0, F_PAD - IN_FEAT)))
    w1_pad = jnp.pad(w1, ((0, F_PAD - IN_FEAT), (0, 0)))

    # bf16 MXU operands; biases / accumulation stay f32
    bf16 = jnp.bfloat16
    a_bf = a_norm.astype(bf16)
    h_bf = h0_pad.astype(bf16)
    w1_bf = w1_pad.astype(bf16)
    w2_bf = w2.astype(bf16)
    w3_bf = w3.astype(bf16)

    out = gat_classifier_forward(a_bf, h_bf, w1_bf, b1, w2_bf, b2, w3_bf, b3)
    out = jax.block_until_ready(out)

    ref = reference_forward(a_bf, h_bf, w1_bf, b1, w2_bf, b2, w3_bf, b3)
    assert out.shape == (N_GRAPHS, N_CLASSES), out.shape
    assert jnp.allclose(out, ref, atol=1e-2, rtol=1e-2), "mismatch vs reference"

    print("KERNEL_OK")
</pallas_src>

<mosaic_0001>
module attributes {stable_mosaic.version = 11 : i64} {
  func.func @gcn_graph_kernel(%arg0: i32, %arg1: memref<1x128x128xbf16, #tpu.memory_space<vmem>>, %arg2: memref<1x128x256xbf16, #tpu.memory_space<vmem>>, %arg3: memref<256x256xbf16, #tpu.memory_space<vmem>>, %arg4: memref<1x256xf32, #tpu.memory_space<vmem>>, %arg5: memref<256x256xbf16, #tpu.memory_space<vmem>>, %arg6: memref<1x256xf32, #tpu.memory_space<vmem>>, %arg7: memref<256x18xbf16, #tpu.memory_space<vmem>>, %arg8: memref<1x18xf32, #tpu.memory_space<vmem>>, %arg9: memref<1x1x18xf32, #tpu.memory_space<vmem>>) attributes {dimension_semantics = [#tpu.dimension_semantics<parallel>], iteration_bounds = array<i64: 4>, scalar_prefetch = 0 : i64, scratch_operands = 0 : i64, tpu.core_type = #tpu.core_type<tc>, window_params = [{transform_indices = @transform_0, window_bounds = array<i64: 1, 128, 128>}, {transform_indices = @transform_1, window_bounds = array<i64: 1, 128, 256>}, {pipeline_mode = #tpu.pipeline_mode<synchronous>, transform_indices = @transform_2, window_bounds = array<i64: 256, 256>}, {pipeline_mode = #tpu.pipeline_mode<synchronous>, transform_indices = @transform_3, window_bounds = array<i64: 1, 256>}, {pipeline_mode = #tpu.pipeline_mode<synchronous>, transform_indices = @transform_4, window_bounds = array<i64: 256, 256>}, {pipeline_mode = #tpu.pipeline_mode<synchronous>, transform_indices = @transform_5, window_bounds = array<i64: 1, 256>}, {pipeline_mode = #tpu.pipeline_mode<synchronous>, transform_indices = @transform_6, window_bounds = array<i64: 256, 18>}, {pipeline_mode = #tpu.pipeline_mode<synchronous>, transform_indices = @transform_7, window_bounds = array<i64: 1, 18>}, {transform_indices = @transform_8, window_bounds = array<i64: 1, 1, 18>}]} {
    %c0 = arith.constant 0 : index
    %c0_0 = arith.constant 0 : index
    %c0_1 = arith.constant 0 : index
    %0 = vector.load %arg1[%c0, %c0_0, %c0_1] : memref<1x128x128xbf16, #tpu.memory_space<vmem>>, vector<1x128x128xbf16>
    %1 = vector.shape_cast %0 : vector<1x128x128xbf16> to vector<128x128xbf16>
    %c0_2 = arith.constant 0 : index
    %c0_3 = arith.constant 0 : index
    %c0_4 = arith.constant 0 : index
    %2 = vector.load %arg2[%c0_2, %c0_3, %c0_4] : memref<1x128x256xbf16, #tpu.memory_space<vmem>>, vector<1x128x256xbf16>
    %3 = vector.shape_cast %2 : vector<1x128x256xbf16> to vector<128x256xbf16>
    %c0_5 = arith.constant 0 : index
    %c0_6 = arith.constant 0 : index
    %4 = vector.load %arg3[%c0_5, %c0_6] : memref<256x256xbf16, #tpu.memory_space<vmem>>, vector<256x256xbf16>
    %cst = arith.constant dense<0.000000e+00> : vector<128x256xf32>
    %5 = tpu.matmul %3, %4, %cst {dimension_numbers = #tpu.dot_dimension_numbers<[1], [0], [0], [1], [0, 0, 1, 1], [], []>} : vector<128x256xbf16>, vector<256x256xbf16>, vector<128x256xf32> -> vector<128x256xf32>
    %6 = arith.truncf %5 : vector<128x256xf32> to vector<128x256xbf16>
    %cst_7 = arith.constant dense<0.000000e+00> : vector<128x256xf32>
    %7 = tpu.matmul %1, %6, %cst_7 {dimension_numbers = #tpu.dot_dimension_numbers<[1], [0], [0], [1], [0, 0, 1, 1], [], []>} : vector<128x128xbf16>, vector<128x256xbf16>, vector<128x256xf32> -> vector<128x256xf32>
    %c0_8 = arith.constant 0 : index
    %c0_9 = arith.constant 0 : index
    %8 = vector.load %arg4[%c0_8, %c0_9] : memref<1x256xf32, #tpu.memory_space<vmem>>, vector<1x256xf32>
    %9 = vector.broadcast %8 : vector<1x256xf32> to vector<128x256xf32>
    %10 = arith.addf %7, %9 : vector<128x256xf32>
    %cst_10 = arith.constant 0.000000e+00 : f32
    %11 = vector.broadcast %cst_10 : f32 to vector<128x256xf32>
    %12 = arith.maximumf %10, %11 : vector<128x256xf32>
    %13 = arith.truncf %12 : vector<128x256xf32> to vector<128x256xbf16>
    %c0_11 = arith.constant 0 : index
    %c0_12 = arith.constant 0 : index
    %14 = vector.load %arg5[%c0_11, %c0_12] : memref<256x256xbf16, #tpu.memory_space<vmem>>, vector<256x256xbf16>
    %cst_13 = arith.constant dense<0.000000e+00> : vector<128x256xf32>
    %15 = tpu.matmul %13, %14, %cst_13 {dimension_numbers = #tpu.dot_dimension_numbers<[1], [0], [0], [1], [0, 0, 1, 1], [], []>} : vector<128x256xbf16>, vector<256x256xbf16>, vector<128x256xf32> -> vector<128x256xf32>
    %16 = arith.truncf %15 : vector<128x256xf32> to vector<128x256xbf16>
    %cst_14 = arith.constant dense<0.000000e+00> : vector<128x256xf32>
    %17 = tpu.matmul %1, %16, %cst_14 {dimension_numbers = #tpu.dot_dimension_numbers<[1], [0], [0], [1], [0, 0, 1, 1], [], []>} : vector<128x128xbf16>, vector<128x256xbf16>, vector<128x256xf32> -> vector<128x256xf32>
    %c0_15 = arith.constant 0 : index
    %c0_16 = arith.constant 0 : index
    %18 = vector.load %arg6[%c0_15, %c0_16] : memref<1x256xf32, #tpu.memory_space<vmem>>, vector<1x256xf32>
    %19 = vector.broadcast %18 : vector<1x256xf32> to vector<128x256xf32>
    %20 = arith.addf %17, %19 : vector<128x256xf32>
    %cst_17 = arith.constant 0.000000e+00 : f32
    %21 = vector.broadcast %cst_17 : f32 to vector<128x256xf32>
    %22 = arith.maximumf %20, %21 : vector<128x256xf32>
    %cst_18 = arith.constant dense<0.000000e+00> : vector<256xf32>
    %23 = vector.multi_reduction <add>, %22, %cst_18 [0] : vector<128x256xf32> to vector<256xf32>
    %24 = vector.shape_cast %23 : vector<256xf32> to vector<1x256xf32>
    %cst_19 = arith.constant 1.280000e+02 : f32
    %25 = vector.broadcast %cst_19 : f32 to vector<1x256xf32>
    %26 = arith.divf %24, %25 : vector<1x256xf32>
    %27 = arith.truncf %26 : vector<1x256xf32> to vector<1x256xbf16>
    %c0_20 = arith.constant 0 : index
    %c0_21 = arith.constant 0 : index
    %28 = vector.load %arg7[%c0_20, %c0_21] : memref<256x18xbf16, #tpu.memory_space<vmem>>, vector<256x18xbf16>
    %cst_22 = arith.constant dense<0.000000e+00> : vector<1x18xf32>
    %29 = tpu.matmul %27, %28, %cst_22 {dimension_numbers = #tpu.dot_dimension_numbers<[1], [0], [0], [1], [0, 0, 1, 1], [], []>} : vector<1x256xbf16>, vector<256x18xbf16>, vector<1x18xf32> -> vector<1x18xf32>
    %c0_23 = arith.constant 0 : index
    %c0_24 = arith.constant 0 : index
    %30 = vector.load %arg8[%c0_23, %c0_24] : memref<1x18xf32, #tpu.memory_space<vmem>>, vector<1x18xf32>
    %31 = arith.addf %29, %30 : vector<1x18xf32>
    %c0_25 = arith.constant 0 : index
    %c0_26 = arith.constant 0 : index
    %c0_27 = arith.constant 0 : index
    %32 = vector.load %arg9[%c0_25, %c0_26, %c0_27] : memref<1x1x18xf32, #tpu.memory_space<vmem>>, vector<1x1x18xf32>
    %33 = vector.shape_cast %32 : vector<1x1x18xf32> to vector<1x18xf32>
    %34 = vector.shape_cast %31 : vector<1x18xf32> to vector<1x1x18xf32>
    tpu.vector_store %arg9[%c0_25, %c0_26, %c0_27], %34 {strides = array<i32>} : memref<1x1x18xf32, #tpu.memory_space<vmem>>, vector<1x1x18xf32>,
    return
  }
  func.func @transform_0(%arg0: i32) -> (i32, i32, i32) {
    %c0_i32 = arith.constant 0 : i32
    %c0_i32_0 = arith.constant 0 : i32
    %c0_i32_1 = arith.constant 0 : i32
    return %arg0, %c0_i32, %c0_i32_0 : i32, i32, i32
  }
  func.func @transform_1(%arg0: i32) -> (i32, i32, i32) {
    %c0_i32 = arith.constant 0 : i32
    %c0_i32_0 = arith.constant 0 : i32
    %c0_i32_1 = arith.constant 0 : i32
    return %arg0, %c0_i32, %c0_i32_0 : i32, i32, i32
  }
  func.func @transform_2(%arg0: i32) -> (i32, i32) {
    %c0_i32 = arith.constant 0 : i32
    %c0_i32_0 = arith.constant 0 : i32
    %c0_i32_1 = arith.constant 0 : i32
    return %c0_i32, %c0_i32_0 : i32, i32
  }
  func.func @transform_3(%arg0: i32) -> (i32, i32) {
    %c0_i32 = arith.constant 0 : i32
    %c0_i32_0 = arith.constant 0 : i32
    %c0_i32_1 = arith.constant 0 : i32
    return %c0_i32, %c0_i32_0 : i32, i32
  }
  func.func @transform_4(%arg0: i32) -> (i32, i32) {
    %c0_i32 = arith.constant 0 : i32
    %c0_i32_0 = arith.constant 0 : i32
    %c0_i32_1 = arith.constant 0 : i32
    return %c0_i32, %c0_i32_0 : i32, i32
  }
  func.func @transform_5(%arg0: i32) -> (i32, i32) {
    %c0_i32 = arith.constant 0 : i32
    %c0_i32_0 = arith.constant 0 : i32
    %c0_i32_1 = arith.constant 0 : i32
    return %c0_i32, %c0_i32_0 : i32, i32
  }
  func.func @transform_6(%arg0: i32) -> (i32, i32) {
    %c0_i32 = arith.constant 0 : i32
    %c0_i32_0 = arith.constant 0 : i32
    %c0_i32_1 = arith.constant 0 : i32
    return %c0_i32, %c0_i32_0 : i32, i32
  }
  func.func @transform_7(%arg0: i32) -> (i32, i32) {
    %c0_i32 = arith.constant 0 : i32
    %c0_i32_0 = arith.constant 0 : i32
    %c0_i32_1 = arith.constant 0 : i32
    return %c0_i32, %c0_i32_0 : i32, i32
  }
  func.func @transform_8(%arg0: i32) -> (i32, i32, i32) {
    %c0_i32 = arith.constant 0 : i32
    %c0_i32_0 = arith.constant 0 : i32
    %c0_i32_1 = arith.constant 0 : i32
    return %arg0, %c0_i32, %c0_i32_0 : i32, i32, i32
  }
}

</mosaic_0001>

<llo_original>
// kernel: tpu_custom_call.1
$region0: #{tpu_custom_call.1}
  #allocation0 [shape = 'u32[]', space=smem, size = 0x4, offset = 0x4, fixed_abs, tag = 'smem constant byte address 0x4 - core index']
  #allocation1 [shape = 'u32[144,128]{1,0:T(1,128)}', space=vmem, size = 0x12000, scoped, tag = 'internal scratch']
  %s0 = inlined_call_operand.hbm [shape: bf16[4,128,128], index: 0, kind: input, shape index: {}]
  %s1 = inlined_call_operand.hbm [shape: bf16[4,128,256], index: 1, kind: input, shape index: {}]
  %s2 = inlined_call_operand.hbm [shape: bf16[256,256], index: 2, kind: input, shape index: {}]
  %s3 = inlined_call_operand.vmem [shape: f32[1,256], index: 3, kind: input, shape index: {}]
  %s4 = inlined_call_operand.hbm [shape: bf16[256,256], index: 4, kind: input, shape index: {}]
  %s5 = inlined_call_operand.vmem [shape: f32[1,256], index: 5, kind: input, shape index: {}]
  %s6 = inlined_call_operand.vmem [shape: bf16[256,18], index: 6, kind: input, shape index: {}]
  %s7 = inlined_call_operand.vmem [shape: f32[1,18], index: 7, kind: input, shape index: {}]
  %s8 = inlined_call_operand.hbm [shape: f32[4,1,18], index: 8, kind: output, shape index: {}]
  %s9 = sld [smem:[#allocation0]]
  $region81: #{tpu_custom_call.1} parent=0
    _
  %s11 = ssub.s32 1, %s9
  %s12 = scalar_select 0, %s11, %s9
  $region1: #{tpu_custom_call.1} parent=0
    #allocation2 [shape = 'u8[65536]{0}', space=vmem, size = 0x10000, scoped, tag = 'input window, operand 0']
    #allocation3 [shape = 's32[2]{0}', space=sflag, size = 0x8, scoped, tag = 'scoped memory for tpu_custom_call.1']
    #allocation4 [shape = 's32[2]{0}', space=sflag, size = 0x8, scoped, tag = 'scoped memory for tpu_custom_call.1']
    #allocation5 [shape = 'u8[131072]{0}', space=vmem, size = 0x20000, scoped, tag = 'input window, operand 1']
    #allocation6 [shape = 's32[2]{0}', space=sflag, size = 0x8, scoped, tag = 'scoped memory for tpu_custom_call.1']
    #allocation7 [shape = 'u8[131072]{0}', space=vmem, size = 0x20000, scoped, tag = 'input window, operand 2, single buffered']
    #allocation8 [shape = 'u8[131072]{0}', space=vmem, size = 0x20000, scoped, tag = 'input window, operand 4, single buffered']
    #allocation9 [shape = 's32[1]{0}', space=sflag, size = 0x4, scoped, tag = 'scoped memory for tpu_custom_call.1']
    #allocation10 [shape = 'u8[1024]{0}', space=vmem, size = 0x400, scoped, tag = 'output window, operand 0']
    %13 = vsyncpa [#allocation3], 0
    %s14 = scalar_lea.sflag [#allocation3], 1
    %15 = vsyncpa %s14, 0
    %16 = vsyncpa [#allocation6], 0
    %s17 = scalar_lea.sflag [#allocation6], 1
    %18 = vsyncpa %s17, 0
    %19 = vsyncpa [#allocation9], 0
    %20 = vsyncpa [#allocation4], 0
    %s21 = scalar_lea.sflag [#allocation4], 1
    %22 = vsyncpa %s21, 0
    loop: start=0, step=1, limit=6
    $region2: #{tpu_custom_call.1} parent=1 // loop_pre_header
      _
    $region3: #{tpu_custom_call.1} parent=1 // loop_header
      %s24 = sphi 0, %s28
      %p25 = scmp.ge.s32.totalorder %s24, 6
      %s34 = sphi 0, %s36
      %s37 = sphi 0, %s34
      %s38 = sphi 0, %s37
      %s54 = sphi 0, %s38
      %s60 = sphi 0, %s62
      %s63 = sphi 0, %s60
      %s64 = sphi 0, %s63
      %s80 = sphi 0, %s64
      %s84 = sphi 0, %s84
      %s86 = sphi 0, %s84
      %s87 = sphi 0, %s86
      %s101 = sphi 0, %s87
      %s105 = sphi 0, %s105
      %s107 = sphi 0, %s105
      %s108 = sphi 0, %s107
      %s122 = sphi 0, %s108
      %s126 = sphi 0, %s126
      %s128 = sphi 0, %s126
      %s129 = sphi 0, %s128
      %s143 = sphi 0, %s129
      %s147 = sphi 0, %s147
      %s149 = sphi 0, %s147
      %s150 = sphi 0, %s149
      %s164 = sphi 0, %s150
      %s168 = sphi 0, %s168
      %s170 = sphi 0, %s168
      %s171 = sphi 0, %s170
      %s185 = sphi 0, %s171
      %s189 = sphi 0, %s189
      %s191 = sphi 0, %s189
      %s192 = sphi 0, %s191
      %s206 = sphi 0, %s192
      %s212 = sphi 0, %s214
      %s215 = sphi 0, %s212
      %s216 = sphi 0, %s215
      %s232 = sphi 0, %s216
    $region4: #{tpu_custom_call.1} parent=1 // loop_header_branch
      %27 = sbr.rel (%p25) target = $region8
    $region5: #{tpu_custom_call.1} parent=1 // loop_body
      %s29 = ssub.s32 %s24, 1
      %s30 = ssub.s32 %s24, 2
      %s31 = sadd.s32 %s24, 1
      %s32 = ssub.s32 %s24, %s31
      %p33 = scmp.eq.s32.totalorder %s32, 0
      %s35 = sadd.s32 %s34, 1
      %s36 = scalar_select %p33, %s34, %s35
      %p39 = pneg %p33
      %p40 = scmp.eq.s32.totalorder %s24, 3
      %p41 = por %p39, %p40
      %p42 = scmp.ne.s32.totalorder %s34, %s37
      %p43 = scmp.eq.s32.totalorder %s24, 0
      %p44 = por %p42, %p43
      %p45 = scmp.ne.s32.totalorder %s34, %s37
      %p46 = scmp.eq.s32.totalorder %s29, 3
      %p47 = por %p45, %p46
      %p48 = scmp.ne.s32.totalorder %s37, %s38
      %p49 = scmp.eq.s32.totalorder %s29, 0
      %p50 = por %p48, %p49
      %p51 = scmp.ne.s32.totalorder %s37, %s38
      %p52 = scmp.eq.s32.totalorder %s30, 3
      %p53 = por %p51, %p52
      %p55 = scmp.ne.s32.totalorder %s38, %s54
      %p56 = scmp.eq.s32.totalorder %s30, 0
      %p57 = por %p55, %p56
      %s58 = ssub.s32 %s24, %s31
      %p59 = scmp.eq.s32.totalorder %s58, 0
      %s61 = sadd.s32 %s60, 1
      %s62 = scalar_select %p59, %s60, %s61
      %p65 = pneg %p59
      %p66 = scmp.eq.s32.totalorder %s24, 3
      %p67 = por %p65, %p66
      %p68 = scmp.ne.s32.totalorder %s60, %s63
      %p69 = scmp.eq.s32.totalorder %s24, 0
      %p70 = por %p68, %p69
      %p71 = scmp.ne.s32.totalorder %s60, %s63
      %p72 = scmp.eq.s32.totalorder %s29, 3
      %p73 = por %p71, %p72
      %p74 = scmp.ne.s32.totalorder %s63, %s64
      %p75 = scmp.eq.s32.totalorder %s29, 0
      %p76 = por %p74, %p75
      %p77 = scmp.ne.s32.totalorder %s63, %s64
      %p78 = scmp.eq.s32.totalorder %s30, 3
      %p79 = por %p77, %p78
      %p81 = scmp.ne.s32.totalorder %s64, %s80
      %p82 = scmp.eq.s32.totalorder %s30, 0
      %p83 = por %p81, %p82
      %s85 = sadd.s32 %s84, 1
      %p88 = scmp.eq.s32.totalorder %s24, 3
      %p89 = scmp.ne.s32.totalorder %s84, %s86
      %p90 = scmp.eq.s32.totalorder %s24, 0
      %p91 = por %p89, %p90
      %p92 = scmp.ne.s32.totalorder %s84, %s86
      %p93 = scmp.eq.s32.totalorder %s29, 3
      %p94 = por %p92, %p93
      %p95 = scmp.ne.s32.totalorder %s86, %s87
      %p96 = scmp.eq.s32.totalorder %s29, 0
      %p97 = por %p95, %p96
      %p98 = scmp.ne.s32.totalorder %s86, %s87
      %p99 = scmp.eq.s32.totalorder %s30, 3
      %p100 = por %p98, %p99
      %p102 = scmp.ne.s32.totalorder %s87, %s101
      %p103 = scmp.eq.s32.totalorder %s30, 0
      %p104 = por %p102, %p103
      %s106 = sadd.s32 %s105, 1
      %p109 = scmp.eq.s32.totalorder %s24, 3
      %p110 = scmp.ne.s32.totalorder %s105, %s107
      %p111 = scmp.eq.s32.totalorder %s24, 0
      %p112 = por %p110, %p111
      %p113 = scmp.ne.s32.totalorder %s105, %s107
      %p114 = scmp.eq.s32.totalorder %s29, 3
      %p115 = por %p113, %p114
      %p116 = scmp.ne.s32.totalorder %s107, %s108
      %p117 = scmp.eq.s32.totalorder %s29, 0
      %p118 = por %p116, %p117
      %p119 = scmp.ne.s32.totalorder %s107, %s108
      %p120 = scmp.eq.s32.totalorder %s30, 3
      %p121 = por %p119, %p120
      %p123 = scmp.ne.s32.totalorder %s108, %s122
      %p124 = scmp.eq.s32.totalorder %s30, 0
      %p125 = por %p123, %p124
      %s127 = sadd.s32 %s126, 1
      %p130 = scmp.eq.s32.totalorder %s24, 3
      %p131 = scmp.ne.s32.totalorder %s126, %s128
      %p132 = scmp.eq.s32.totalorder %s24, 0
      %p133 = por %p131, %p132
      %p134 = scmp.ne.s32.totalorder %s126, %s128
      %p135 = scmp.eq.s32.totalorder %s29, 3
      %p136 = por %p134, %p135
      %p137 = scmp.ne.s32.totalorder %s128, %s129
      %p138 = scmp.eq.s32.totalorder %s29, 0
      %p139 = por %p137, %p138
      %p140 = scmp.ne.s32.totalorder %s128, %s129
      %p141 = scmp.eq.s32.totalorder %s30, 3
      %p142 = por %p140, %p141
      %p144 = scmp.ne.s32.totalorder %s129, %s143
      %p145 = scmp.eq.s32.totalorder %s30, 0
      %p146 = por %p144, %p145
      %s148 = sadd.s32 %s147, 1
      %p151 = scmp.eq.s32.totalorder %s24, 3
      %p152 = scmp.ne.s32.totalorder %s147, %s149
      %p153 = scmp.eq.s32.totalorder %s24, 0
      %p154 = por %p152, %p153
      %p155 = scmp.ne.s32.totalorder %s147, %s149
      %p156 = scmp.eq.s32.totalorder %s29, 3
      %p157 = por %p155, %p156
      %p158 = scmp.ne.s32.totalorder %s149, %s150
      %p159 = scmp.eq.s32.totalorder %s29, 0
      %p160 = por %p158, %p159
      %p161 = scmp.ne.s32.totalorder %s149, %s150
      %p162 = scmp.eq.s32.totalorder %s30, 3
      %p163 = por %p161, %p162
      %p165 = scmp.ne.s32.totalorder %s150, %s164
      %p166 = scmp.eq.s32.totalorder %s30, 0
      %p167 = por %p165, %p166
      %s169 = sadd.s32 %s168, 1
      %p172 = scmp.eq.s32.totalorder %s24, 3
      %p173 = scmp.ne.s32.totalorder %s168, %s170
      %p174 = scmp.eq.s32.totalorder %s24, 0
      %p175 = por %p173, %p174
      %p176 = scmp.ne.s32.totalorder %s168, %s170
      %p177 = scmp.eq.s32.totalorder %s29, 3
      %p178 = por %p176, %p177
      %p179 = scmp.ne.s32.totalorder %s170, %s171
      %p180 = scmp.eq.s32.totalorder %s29, 0
      %p181 = por %p179, %p180
      %p182 = scmp.ne.s32.totalorder %s170, %s171
      %p183 = scmp.eq.s32.totalorder %s30, 3
      %p184 = por %p182, %p183
      %p186 = scmp.ne.s32.totalorder %s171, %s185
      %p187 = scmp.eq.s32.totalorder %s30, 0
      %p188 = por %p186, %p187
      %s190 = sadd.s32 %s189, 1
      %p193 = scmp.eq.s32.totalorder %s24, 3
      %p194 = scmp.ne.s32.totalorder %s189, %s191
      %p195 = scmp.eq.s32.totalorder %s24, 0
      %p196 = por %p194, %p195
      %p197 = scmp.ne.s32.totalorder %s189, %s191
      %p198 = scmp.eq.s32.totalorder %s29, 3
      %p199 = por %p197, %p198
      %p200 = scmp.ne.s32.totalorder %s191, %s192
      %p201 = scmp.eq.s32.totalorder %s29, 0
      %p202 = por %p200, %p201
      %p203 = scmp.ne.s32.totalorder %s191, %s192
      %p204 = scmp.eq.s32.totalorder %s30, 3
      %p205 = por %p203, %p204
      %p207 = scmp.ne.s32.totalorder %s192, %s206
      %p208 = scmp.eq.s32.totalorder %s30, 0
      %p209 = por %p207, %p208
      %s210 = ssub.s32 %s24, %s31
      %p211 = scmp.eq.s32.totalorder %s210, 0
      %s213 = sadd.s32 %s212, 1
      %s214 = scalar_select %p211, %s212, %s213
      %p217 = pneg %p211
      %p218 = scmp.eq.s32.totalorder %s24, 3
      %p219 = por %p217, %p218
      %p220 = scmp.ne.s32.totalorder %s212, %s215
      %p221 = scmp.eq.s32.totalorder %s24, 0
      %p222 = por %p220, %p221
      %p223 = scmp.ne.s32.totalorder %s212, %s215
      %p224 = scmp.eq.s32.totalorder %s29, 3
      %p225 = por %p223, %p224
      %p226 = scmp.ne.s32.totalorder %s215, %s216
      %p227 = scmp.eq.s32.totalorder %s29, 0
      %p228 = por %p226, %p227
      %p229 = scmp.ne.s32.totalorder %s215, %s216
      %p230 = scmp.eq.s32.totalorder %s30, 3
      %p231 = por %p229, %p230
      %p233 = scmp.ne.s32.totalorder %s216, %s232
      %p234 = scmp.eq.s32.totalorder %s30, 0
      %p235 = por %p233, %p234
      %p236 = scmp.le.s32.totalorder 1, %s24
      %p237 = scmp.lt.s32.totalorder %s24, 5
      %p238 = pnand %p236, %p237
      %p239 = pneg %p238
      // Predicated region
      $region9: #{tpu_custom_call.1} parent=5 // pred_check
        _
      $region10: #{tpu_custom_call.1} parent=5 // pred_check_branch
        %241 = sbr.rel (%p238) target = $region12
      $region11: #{tpu_custom_call.1} parent=5 // pred_region
        %s242 = ssub.s32 %s24, 1
        // Predicated region
        $region13: #{tpu_custom_call.1} parent=11 // pred_check
          %p243 = pneg %p97
        $region14: #{tpu_custom_call.1} parent=11 // pred_check_branch
          %245 = sbr.rel (%p243) target = $region16
        $region15: #{tpu_custom_call.1} parent=11 // pred_region
          %s247 = ssub.s32 4096, 4096
          %248 = vsyncadd [#allocation6], %s247
          %s249 = sshll.u32 [#allocation7], 4
          %s250 = int_to_ptr.vmem [resolvable:$true] %s249
          %255 = dma.hbm_to_vmem [thread:$0]  %s2, 4096, %s250, [#allocation6], 128, 128, 8
        $region16: #{tpu_custom_call.1} parent=11 // pred_fallthru
          _
        // Predicated region
        $region17: #{tpu_custom_call.1} parent=11 // pred_check
          %p256 = pneg %p118
        $region18: #{tpu_custom_call.1} parent=11 // pred_check_branch
          %258 = sbr.rel (%p256) target = $region20
        $region19: #{tpu_custom_call.1} parent=11 // pred_region
          _
        $region20: #{tpu_custom_call.1} parent=11 // pred_fallthru
          _
        // Predicated region
        $region21: #{tpu_custom_call.1} parent=11 // pred_check
          %p259 = pneg %p139
        $region22: #{tpu_custom_call.1} parent=11 // pred_check_branch
          %261 = sbr.rel (%p259) target = $region24
        $region23: #{tpu_custom_call.1} parent=11 // pred_region
          %s263 = ssub.s32 4096, 4096
          %264 = vsyncadd [#allocation9], %s263
          %s265 = sshll.u32 [#allocation8], 4
          %s266 = int_to_ptr.vmem [resolvable:$true] %s265
          %271 = dma.hbm_to_vmem [thread:$0]  %s4, 4096, %s266, [#allocation9], 128, 128, 8
        $region24: #{tpu_custom_call.1} parent=11 // pred_fallthru
          _
        // Predicated region
        $region25: #{tpu_custom_call.1} parent=11 // pred_check
          %p272 = pneg %p160
        $region26: #{tpu_custom_call.1} parent=11 // pred_check_branch
          %274 = sbr.rel (%p272) target = $region28
        $region27: #{tpu_custom_call.1} parent=11 // pred_region
          _
        $region28: #{tpu_custom_call.1} parent=11 // pred_fallthru
          _
        // Predicated region
        $region29: #{tpu_custom_call.1} parent=11 // pred_check
          %p275 = pneg %p181
        $region30: #{tpu_custom_call.1} parent=11 // pred_check_branch
          %277 = sbr.rel (%p275) target = $region32
        $region31: #{tpu_custom_call.1} parent=11 // pred_region
          _
        $region32: #{tpu_custom_call.1} parent=11 // pred_fallthru
          _
        // Predicated region
        $region33: #{tpu_custom_call.1} parent=11 // pred_check
          %p278 = pneg %p202
        $region34: #{tpu_custom_call.1} parent=11 // pred_check_branch
          %280 = sbr.rel (%p278) target = $region36
        $region35: #{tpu_custom_call.1} parent=11 // pred_region
          _
        $region36: #{tpu_custom_call.1} parent=11 // pred_fallthru
          _
      $region12: #{tpu_custom_call.1} parent=5 // pred_fallthru
        _
      %p281 = scmp.lt.s32.totalorder %s24, 4
      // Predicated region
      $region37: #{tpu_custom_call.1} parent=5 // pred_check
        %p282 = pneg %p281
      $region38: #{tpu_custom_call.1} parent=5 // pred_check_branch
        %284 = sbr.rel (%p282) target = $region40
      $region39: #{tpu_custom_call.1} parent=5 // pred_region
        // Predicated region
        $region41: #{tpu_custom_call.1} parent=39 // pred_check
          %p285 = pneg %p44
        $region42: #{tpu_custom_call.1} parent=39 // pred_check_branch
          %287 = sbr.rel (%p285) target = $region44
        $region43: #{tpu_custom_call.1} parent=39 // pred_region
          %s288 = sand.u32 %s34, 1
          %s289 = scalar_lea.sflag [#allocation3], %s288
          %s290 = sand.u32 %s34, 1
          %s291 = smul.addr %s290, 64
          %s292 = scalar_lea.vmem [#allocation2], %s291
          %s294 = ssub.s32 1024, 1024
          %295 = vsyncadd %s289, %s294
          %s296 = smul.addr %s24, 16
          %s297 = smul.addr %s296, 64
          %s298 = scalar_lea.hbm %s0, %s297
          %s299 = sshll.u32 %s292, 4
          %s300 = int_to_ptr.vmem [resolvable:$true] %s299
          %305 = dma.hbm_to_vmem [thread:$0]  %s298, 1024, %s300, %s289, 64, 64, 4
        $region44: #{tpu_custom_call.1} parent=39 // pred_fallthru
          _
        // Predicated region
        $region45: #{tpu_custom_call.1} parent=39 // pred_check
          %p306 = pneg %p70
        $region46: #{tpu_custom_call.1} parent=39 // pred_check_branch
          %308 = sbr.rel (%p306) target = $region48
        $region47: #{tpu_custom_call.1} parent=39 // pred_region
          %s309 = sand.u32 %s24, 1
          %s310 = scalar_lea.sflag [#allocation6], %s309
          %s311 = sand.u32 %s60, 1
          %s312 = smul.addr %s311, 128
          %s313 = scalar_lea.vmem [#allocation5], %s312
          %s315 = ssub.s32 2048, 2048
          %316 = vsyncadd %s310, %s315
          %s317 = smul.addr %s24, 32
          %s318 = smul.addr %s317, 64
          %s319 = scalar_lea.hbm %s1, %s318
          %s320 = sshll.u32 %s313, 4
          %s321 = int_to_ptr.vmem [resolvable:$true] %s320
          %326 = dma.hbm_to_vmem [thread:$0]  %s319, 2048, %s321, %s310, 128, 128, 8
        $region48: #{tpu_custom_call.1} parent=39 // pred_fallthru
          _
      $region40: #{tpu_custom_call.1} parent=5 // pred_fallthru
        _
      %p327 = scmp.le.s32.totalorder 1, %s24
      %p328 = scmp.lt.s32.totalorder %s24, 5
      %p329 = pnand %p327, %p328
      %p330 = pneg %p329
      // Predicated region
      $region49: #{tpu_custom_call.1} parent=5 // pred_check
        _
      $region50: #{tpu_custom_call.1} parent=5 // pred_check_branch
        %332 = sbr.rel (%p329) target = $region52
      $region51: #{tpu_custom_call.1} parent=5 // pred_region
        %s333 = ssub.s32 %s24, 1
        %s334 = sand.u32 %s37, 1
        %s335 = scalar_lea.sflag [#allocation3], %s334
        %s336 = sand.u32 %s37, 1
        %s337 = smul.addr %s336, 64
        %s338 = scalar_lea.vmem [#allocation2], %s337
        // Predicated region
        $region53: #{tpu_custom_call.1} parent=51 // pred_check
          %p339 = pneg %p50
        $region54: #{tpu_custom_call.1} parent=51 // pred_check_branch
          %341 = sbr.rel (%p339) target = $region56
        $region55: #{tpu_custom_call.1} parent=51 // pred_region
          %342 = dma.done %s335, 1024
        $region56: #{tpu_custom_call.1} parent=51 // pred_fallthru
          _
        %s343 = sand.u32 %s29, 1
        %s344 = scalar_lea.sflag [#allocation6], %s343
        %s345 = sand.u32 %s63, 1
        %s346 = smul.addr %s345, 128
        %s347 = scalar_lea.vmem [#allocation5], %s346
        // Predicated region
        $region57: #{tpu_custom_call.1} parent=51 // pred_check
          %p348 = pneg %p76
        $region58: #{tpu_custom_call.1} parent=51 // pred_check_branch
          %350 = sbr.rel (%p348) target = $region60
        $region59: #{tpu_custom_call.1} parent=51 // pred_region
          %351 = dma.done %s344, 2048
        $region60: #{tpu_custom_call.1} parent=51 // pred_fallthru
          _
        // Predicated region
        $region61: #{tpu_custom_call.1} parent=51 // pred_check
          %p352 = pneg %p97
        $region62: #{tpu_custom_call.1} parent=51 // pred_check_branch
          %354 = sbr.rel (%p352) target = $region64
        $region63: #{tpu_custom_call.1} parent=51 // pred_region
          %355 = dma.done [#allocation6], 4096
        $region64: #{tpu_custom_call.1} parent=51 // pred_fallthru
          _
        // Predicated region
        $region65: #{tpu_custom_call.1} parent=51 // pred_check
          %p356 = pneg %p139
        $region66: #{tpu_custom_call.1} parent=51 // pred_check_branch
          %358 = sbr.rel (%p356) target = $region68
        $region67: #{tpu_custom_call.1} parent=51 // pred_region
          %359 = dma.done [#allocation9], 4096
        $region68: #{tpu_custom_call.1} parent=51 // pred_fallthru
          _
        %s360 = sand.u32 %s37, 1
        %s361 = scalar_lea.sflag [#allocation3], %s360
        %s362 = sand.u32 %s37, 1
        %s363 = smul.addr %s362, 64
        %s364 = scalar_lea.vmem [#allocation2], %s363
        %p365 = pneg %p50
        %p366 = pneg %p47
        %s367 = sand.u32 %s29, 1
        %s368 = scalar_lea.sflag [#allocation6], %s367
        %s369 = sand.u32 %s63, 1
        %s370 = smul.addr %s369, 128
        %s371 = scalar_lea.vmem [#allocation5], %s370
        %p372 = pneg %p76
        %p373 = pneg %p73
        %p374 = pneg %p97
        %p375 = pneg %p94
        %p376 = pneg %p118
        %p377 = pneg %p115
        %p378 = pneg %p139
        %p379 = pneg %p136
        %p380 = pneg %p160
        %p381 = pneg %p157
        %p382 = pneg %p181
        %p383 = pneg %p178
        %p384 = pneg %p202
        %p385 = pneg %p199
        %p386 = pneg %p228
        %p387 = pneg %p225
        %s388 = sand.u32 %s215, 1
        %s389 = scalar_lea.sflag [#allocation4], %s388
        %s390 = sand.u32 %s215, 1
        %s391 = scalar_lea.vmem [#allocation10], %s390
        %v393 = vld [vmem:[%s338] sm:$0xf]
        %v394 = vld [vmem:[%s338 + $0x4] sm:$0xf]
        %v395 = vld [vmem:[%s338 + $0x8] sm:$0xf]
        %v396 = vld [vmem:[%s338 + $0xc] sm:$0xf]
        %v397 = vld [vmem:[%s338 + $0x10] sm:$0xf]
        %v398 = vld [vmem:[%s338 + $0x14] sm:$0xf]
        %v399 = vld [vmem:[%s338 + $0x18] sm:$0xf]
        %v400 = vld [vmem:[%s338 + $0x1c] sm:$0xf]
        %v401 = vld [vmem:[%s338 + $0x20] sm:$0xf]
        %v402 = vld [vmem:[%s338 + $0x24] sm:$0xf]
        %v403 = vld [vmem:[%s338 + $0x28] sm:$0xf]
        %v404 = vld [vmem:[%s338 + $0x2c] sm:$0xf]
        %v405 = vld [vmem:[%s338 + $0x30] sm:$0xf]
        %v406 = vld [vmem:[%s338 + $0x34] sm:$0xf]
        %v407 = vld [vmem:[%s338 + $0x38] sm:$0xf]
        %v408 = vld [vmem:[%s338 + $0x3c] sm:$0xf]
        %v409 = vld [vmem:[%s347] sm:$0xff]
        %v410 = vld [vmem:[%s347 + $0x8] sm:$0xff]
        %v411 = vld [vmem:[%s347 + $0x10] sm:$0xff]
        %v412 = vld [vmem:[%s347 + $0x18] sm:$0xff]
        %v413 = vld [vmem:[%s347 + $0x20] sm:$0xff]
        %v414 = vld [vmem:[%s347 + $0x28] sm:$0xff]
        %v415 = vld [vmem:[%s347 + $0x30] sm:$0xff]
        %v416 = vld [vmem:[%s347 + $0x38] sm:$0xff]
        %v417 = vld [vmem:[%s347 + $0x40] sm:$0xff]
        %v418 = vld [vmem:[%s347 + $0x48] sm:$0xff]
        %v419 = vld [vmem:[%s347 + $0x50] sm:$0xff]
        %v420 = vld [vmem:[%s347 + $0x58] sm:$0xff]
        %v421 = vld [vmem:[%s347 + $0x60] sm:$0xff]
        %v422 = vld [vmem:[%s347 + $0x68] sm:$0xff]
        %v423 = vld [vmem:[%s347 + $0x70] sm:$0xff]
        %v424 = vld [vmem:[%s347 + $0x78] sm:$0xff]
        %v425 = vld [vmem:[#allocation7] sm:$0xff]
        %v426 = vld [vmem:[#allocation7 + $0x8] sm:$0xff]
        %v427 = vld [vmem:[#allocation7 + $0x10] sm:$0xff]
        %v428 = vld [vmem:[#allocation7 + $0x18] sm:$0xff]
        %v429 = vld [vmem:[#allocation7 + $0x20] sm:$0xff]
        %v430 = vld [vmem:[#allocation7 + $0x28] sm:$0xff]
        %v431 = vld [vmem:[#allocation7 + $0x30] sm:$0xff]
        %v432 = vld [vmem:[#allocation7 + $0x38] sm:$0xff]
        %v433 = vld [vmem:[#allocation7 + $0x40] sm:$0xff]
        %v434 = vld [vmem:[#allocation7 + $0x48] sm:$0xff]
        %v435 = vld [vmem:[#allocation7 + $0x50] sm:$0xff]
        %v436 = vld [vmem:[#allocation7 + $0x58] sm:$0xff]
        %v437 = vld [vmem:[#allocation7 + $0x60] sm:$0xff]
        %v438 = vld [vmem:[#allocation7 + $0x68] sm:$0xff]
        %v439 = vld [vmem:[#allocation7 + $0x70] sm:$0xff]
        %v440 = vld [vmem:[#allocation7 + $0x78] sm:$0xff]
        %v441 = vld [vmem:[#allocation7 + $0x80] sm:$0xff]
        %v442 = vld [vmem:[#allocation7 + $0x88] sm:$0xff]
        %v443 = vld [vmem:[#allocation7 + $0x90] sm:$0xff]
        %v444 = vld [vmem:[#allocation7 + $0x98] sm:$0xff]
        %v445 = vld [vmem:[#allocation7 + $0xa0] sm:$0xff]
        %v446 = vld [vmem:[#allocation7 + $0xa8] sm:$0xff]
        %v447 = vld [vmem:[#allocation7 + $0xb0] sm:$0xff]
        %v448 = vld [vmem:[#allocation7 + $0xb8] sm:$0xff]
        %v449 = vld [vmem:[#allocation7 + $0xc0] sm:$0xff]
        %v450 = vld [vmem:[#allocation7 + $0xc8] sm:$0xff]
        %v451 = vld [vmem:[#allocation7 + $0xd0] sm:$0xff]
        %v452 = vld [vmem:[#allocation7 + $0xd8] sm:$0xff]
        %v453 = vld [vmem:[#allocation7 + $0xe0] sm:$0xff]
        %v454 = vld [vmem:[#allocation7 + $0xe8] sm:$0xff]
        %v455 = vld [vmem:[#allocation7 + $0xf0] sm:$0xff]
        %v456 = vld [vmem:[#allocation7 + $0xf8] sm:$0xff]
        %v473 = vunpack.c.l.b16 %v409
        %v474 = vunpack.c.h.b16 %v409
        %v475 = vunpack.c.l.b16 %v410
        %v476 = vunpack.c.h.b16 %v410
        %v477 = vunpack.c.l.b16 %v411
        %v478 = vunpack.c.h.b16 %v411
        %v479 = vunpack.c.l.b16 %v412
        %v480 = vunpack.c.h.b16 %v412
        %v481 = vunpack.c.l.b16 %v413
        %v482 = vunpack.c.h.b16 %v413
        %v483 = vunpack.c.l.b16 %v414
        %v484 = vunpack.c.h.b16 %v414
        %v485 = vunpack.c.l.b16 %v415
        %v486 = vunpack.c.h.b16 %v415
        %v487 = vunpack.c.l.b16 %v416
        %v488 = vunpack.c.h.b16 %v416
        %v489 = vunpack.c.l.b16 %v417
        %v490 = vunpack.c.h.b16 %v417
        %v491 = vunpack.c.l.b16 %v418
        %v492 = vunpack.c.h.b16 %v418
        %v493 = vunpack.c.l.b16 %v419
        %v494 = vunpack.c.h.b16 %v419
        %v495 = vunpack.c.l.b16 %v420
        %v496 = vunpack.c.h.b16 %v420
        %v497 = vunpack.c.l.b16 %v421
        %v498 = vunpack.c.h.b16 %v421
        %v499 = vunpack.c.l.b16 %v422
        %v500 = vunpack.c.h.b16 %v422
        %v501 = vunpack.c.l.b16 %v423
        %v502 = vunpack.c.h.b16 %v423
        %v503 = vunpack.c.l.b16 %v424
        %v504 = vunpack.c.h.b16 %v424
        %v505 = vpack.c.b16 %v475, %v473
        %v506 = vpack.c.b16 %v476, %v474
        %v507 = vpack.c.b16 %v479, %v477
        %v508 = vpack.c.b16 %v480, %v478
        %v509 = vpack.c.b16 %v483, %v481
        %v510 = vpack.c.b16 %v484, %v482
        %v511 = vpack.c.b16 %v487, %v485
        %v512 = vpack.c.b16 %v488, %v486
        %v513 = vpack.c.b16 %v491, %v489
        %v514 = vpack.c.b16 %v492, %v490
        %v515 = vpack.c.b16 %v495, %v493
        %v516 = vpack.c.b16 %v496, %v494
        %v517 = vpack.c.b16 %v499, %v497
        %v518 = vpack.c.b16 %v500, %v498
        %v519 = vpack.c.b16 %v503, %v501
        %v520 = vpack.c.b16 %v504, %v502
        %v569 = vunpack.c.l.b16 %v425
        %v570 = vunpack.c.h.b16 %v425
        %v571 = vunpack.c.l.b16 %v426
        %v572 = vunpack.c.h.b16 %v426
        %v573 = vunpack.c.l.b16 %v427
        %v574 = vunpack.c.h.b16 %v427
        %v575 = vunpack.c.l.b16 %v428
        %v576 = vunpack.c.h.b16 %v428
        %v577 = vunpack.c.l.b16 %v429
        %v578 = vunpack.c.h.b16 %v429
        %v579 = vunpack.c.l.b16 %v430
        %v580 = vunpack.c.h.b16 %v430
        %v581 = vunpack.c.l.b16 %v431
        %v582 = vunpack.c.h.b16 %v431
        %v583 = vunpack.c.l.b16 %v432
        %v584 = vunpack.c.h.b16 %v432
        %v585 = vunpack.c.l.b16 %v433
        %v586 = vunpack.c.h.b16 %v433
        %v587 = vunpack.c.l.b16 %v434
        %v588 = vunpack.c.h.b16 %v434
        %v589 = vunpack.c.l.b16 %v435
        %v590 = vunpack.c.h.b16 %v435
        %v591 = vunpack.c.l.b16 %v436
        %v592 = vunpack.c.h.b16 %v436
        %v593 = vunpack.c.l.b16 %v437
        %v594 = vunpack.c.h.b16 %v437
        %v595 = vunpack.c.l.b16 %v438
        %v596 = vunpack.c.h.b16 %v438
        %v597 = vunpack.c.l.b16 %v439
        %v598 = vunpack.c.h.b16 %v439
        %v599 = vunpack.c.l.b16 %v440
        %v600 = vunpack.c.h.b16 %v440
        %v601 = vunpack.c.l.b16 %v441
        %v602 = vunpack.c.h.b16 %v441
        %v603 = vunpack.c.l.b16 %v442
        %v604 = vunpack.c.h.b16 %v442
        %v605 = vunpack.c.l.b16 %v443
        %v606 = vunpack.c.h.b16 %v443
        %v607 = vunpack.c.l.b16 %v444
        %v608 = vunpack.c.h.b16 %v444
        %v609 = vunpack.c.l.b16 %v445
        %v610 = vunpack.c.h.b16 %v445
        %v611 = vunpack.c.l.b16 %v446
        %v612 = vunpack.c.h.b16 %v446
        %v613 = vunpack.c.l.b16 %v447
        %v614 = vunpack.c.h.b16 %v447
        %v615 = vunpack.c.l.b16 %v448
        %v616 = vunpack.c.h.b16 %v448
        %v617 = vunpack.c.l.b16 %v449
        %v618 = vunpack.c.h.b16 %v449
        %v619 = vunpack.c.l.b16 %v450
        %v620 = vunpack.c.h.b16 %v450
        %v621 = vunpack.c.l.b16 %v451
        %v622 = vunpack.c.h.b16 %v451
        %v623 = vunpack.c.l.b16 %v452
        %v624 = vunpack.c.h.b16 %v452
        %v625 = vunpack.c.l.b16 %v453
        %v626 = vunpack.c.h.b16 %v453
        %v627 = vunpack.c.l.b16 %v454
        %v628 = vunpack.c.h.b16 %v454
        %v629 = vunpack.c.l.b16 %v455
        %v630 = vunpack.c.h.b16 %v455
        %v631 = vunpack.c.l.b16 %v456
        %v632 = vunpack.c.h.b16 %v456
        %v633 = vpack.c.b16 %v571, %v569
        %v634 = vpack.c.b16 %v572, %v570
        %v635 = vpack.c.b16 %v575, %v573
        %v636 = vpack.c.b16 %v576, %v574
        %v637 = vpack.c.b16 %v579, %v577
        %v638 = vpack.c.b16 %v580, %v578
        %v639 = vpack.c.b16 %v583, %v581
        %v640 = vpack.c.b16 %v584, %v582
        %v641 = vpack.c.b16 %v587, %v585
        %v642 = vpack.c.b16 %v588, %v586
        %v643 = vpack.c.b16 %v591, %v589
        %v644 = vpack.c.b16 %v592, %v590
        %v645 = vpack.c.b16 %v595, %v593
        %v646 = vpack.c.b16 %v596, %v594
        %v647 = vpack.c.b16 %v599, %v597
        %v648 = vpack.c.b16 %v600, %v598
        %v649 = vpack.c.b16 %v603, %v601
        %v650 = vpack.c.b16 %v604, %v602
        %v651 = vpack.c.b16 %v607, %v605
        %v652 = vpack.c.b16 %v608, %v606
        %v653 = vpack.c.b16 %v611, %v609
        %v654 = vpack.c.b16 %v612, %v610
        %v655 = vpack.c.b16 %v615, %v613
        %v656 = vpack.c.b16 %v616, %v614
        %v657 = vpack.c.b16 %v619, %v617
        %v658 = vpack.c.b16 %v620, %v618
        %v659 = vpack.c.b16 %v623, %v621
        %v660 = vpack.c.b16 %v624, %v622
        %v661 = vpack.c.b16 %v627, %v625
        %v662 = vpack.c.b16 %v628, %v626
        %v663 = vpack.c.b16 %v631, %v629
        %v664 = vpack.c.b16 %v632, %v630
        %697 = vmatprep.subr.bf16.mxu0 %v634
        %698 = vmatpush1.bf16.msra.mxu0 %v633
        %699 = vmatprep.subr.bf16.mxu0 %v636
        %700 = vmatpush1.bf16.msra.mxu0 %v635
        %701 = vmatprep.subr.bf16.mxu0 %v638
        %702 = vmatpush1.bf16.msra.mxu0 %v637
        %703 = vmatprep.subr.bf16.mxu0 %v640
        %704 = vmatpush1.bf16.msra.mxu0 %v639
        %705 = vmatprep.subr.bf16.mxu0 %v642
        %706 = vmatpush1.bf16.msra.mxu0 %v641
        %707 = vmatprep.subr.bf16.mxu0 %v644
        %708 = vmatpush1.bf16.msra.mxu0 %v643
        %709 = vmatprep.subr.bf16.mxu0 %v646
        %710 = vmatpush1.bf16.msra.mxu0 %v645
        %711 = vmatprep.subr.bf16.mxu0 %v648
        %712 = vmatpush1.bf16.msra.mxu0 %v647
        %713 = vmatprep.subr.bf16.mxu0 %v650
        %714 = vmatpush1.bf16.msra.mxu0 %v649
        %715 = vmatprep.subr.bf16.mxu0 %v652
        %716 = vmatpush1.bf16.msra.mxu0 %v651
        %717 = vmatprep.subr.bf16.mxu0 %v654
        %718 = vmatpush1.bf16.msra.mxu0 %v653
        %719 = vmatprep.subr.bf16.mxu0 %v656
        %720 = vmatpush1.bf16.msra.mxu0 %v655
        %721 = vmatprep.subr.bf16.mxu0 %v658
        %722 = vmatpush1.bf16.msra.mxu0 %v657
        %723 = vmatprep.subr.bf16.mxu0 %v660
        %724 = vmatpush1.bf16.msra.mxu0 %v659
        %725 = vmatprep.subr.bf16.mxu0 %v662
        %726 = vmatpush1.bf16.msra.mxu0 %v661
        %727 = vmatprep.subr.bf16.mxu0 %v664
        %728 = vmatpush1.bf16.msra.mxu0 %v663
        %729 = vmatprep.mubr.bf16.mxu0 %v506
        %730 = vmatmul.mubr.bf16.gmra.mrb[0].mxu0 %v505
        %v731 = vpop.f32.mrb[0].mxu0
        %v732 = vadd.f32 0.0, %v731
        %v733 = vpop.f32.mrb[0].mxu0
        %v734 = vadd.f32 0.0, %v733
        %v735 = vpop.f32.mrb[0].mxu0
        %v736 = vadd.f32 0.0, %v735
        %v737 = vpop.f32.mrb[0].mxu0
        %v738 = vadd.f32 0.0, %v737
        %739 = vmatprep.mubr.bf16.mxu0 %v508
        %740 = vmatmul.mubr.bf16.gmra.mrb[0].mxu0 %v507
        %v741 = vpop.f32.mrb[0].mxu0
        %v742 = vadd.f32 0.0, %v741
        %v743 = vpop.f32.mrb[0].mxu0
        %v744 = vadd.f32 0.0, %v743
        %v745 = vpop.f32.mrb[0].mxu0
        %v746 = vadd.f32 0.0, %v745
        %v747 = vpop.f32.mrb[0].mxu0
        %v748 = vadd.f32 0.0, %v747
        %749 = vmatprep.mubr.bf16.mxu0 %v510
        %750 = vmatmul.mubr.bf16.gmra.mrb[0].mxu0 %v509
        %v751 = vpop.f32.mrb[0].mxu0
        %v752 = vadd.f32 0.0, %v751
        %v753 = vpop.f32.mrb[0].mxu0
        %v754 = vadd.f32 0.0, %v753
        %v755 = vpop.f32.mrb[0].mxu0
        %v756 = vadd.f32 0.0, %v755
        %v757 = vpop.f32.mrb[0].mxu0
        %v758 = vadd.f32 0.0, %v757
        %759 = vmatprep.mubr.bf16.mxu0 %v512
        %760 = vmatmul.mubr.bf16.gmra.mrb[0].mxu0 %v511
        %v761 = vpop.f32.mrb[0].mxu0
        %v762 = vadd.f32 0.0, %v761
        %v763 = vpop.f32.mrb[0].mxu0
        %v764 = vadd.f32 0.0, %v763
        %v765 = vpop.f32.mrb[0].mxu0
        %v766 = vadd.f32 0.0, %v765
        %v767 = vpop.f32.mrb[0].mxu0
        %v768 = vadd.f32 0.0, %v767
        %769 = vmatprep.mubr.bf16.mxu0 %v514
        %770 = vmatmul.mubr.bf16.gmra.mrb[0].mxu0 %v513
        %v771 = vpop.f32.mrb[0].mxu0
        %v772 = vadd.f32 0.0, %v771
        %v773 = vpop.f32.mrb[0].mxu0
        %v774 = vadd.f32 0.0, %v773
        %v775 = vpop.f32.mrb[0].mxu0
        %v776 = vadd.f32 0.0, %v775
        %v777 = vpop.f32.mrb[0].mxu0
        %v778 = vadd.f32 0.0, %v777
        %779 = vmatprep.mubr.bf16.mxu0 %v516
        %780 = vmatmul.mubr.bf16.gmra.mrb[0].mxu0 %v515
        %v781 = vpop.f32.mrb[0].mxu0
        %v782 = vadd.f32 0.0, %v781
        %v783 = vpop.f32.mrb[0].mxu0
        %v784 = vadd.f32 0.0, %v783
        %v785 = vpop.f32.mrb[0].mxu0
        %v786 = vadd.f32 0.0, %v785
        %v787 = vpop.f32.mrb[0].mxu0
        %v788 = vadd.f32 0.0, %v787
        %789 = vmatprep.mubr.bf16.mxu0 %v518
        %790 = vmatmul.mubr.bf16.gmra.mrb[0].mxu0 %v517
        %v791 = vpop.f32.mrb[0].mxu0
        %v792 = vadd.f32 0.0, %v791
        %v793 = vpop.f32.mrb[0].mxu0
        %v794 = vadd.f32 0.0, %v793
        %v795 = vpop.f32.mrb[0].mxu0
        %v796 = vadd.f32 0.0, %v795
        %v797 = vpop.f32.mrb[0].mxu0
        %v798 = vadd.f32 0.0, %v797
        %799 = vmatprep.mubr.bf16.mxu0 %v520
        %800 = vmatmul.mubr.bf16.gmra.mrb[0].mxu0 %v519
        %v801 = vpop.f32.mrb[0].mxu0
        %v802 = vadd.f32 0.0, %v801
        %v803 = vpop.f32.mrb[0].mxu0
        %v804 = vadd.f32 0.0, %v803
        %v805 = vpop.f32.mrb[0].mxu0
        %v806 = vadd.f32 0.0, %v805
        %v807 = vpop.f32.mrb[0].mxu0
        %v808 = vadd.f32 0.0, %v807
        %809 = vdwg.mxu0
        %v810 = vpack.c.bf16 %v736, %v732
        %v811 = vpack.c.bf16 %v738, %v734
        %v812 = vpack.c.bf16 %v746, %v742
        %v813 = vpack.c.bf16 %v748, %v744
        %v814 = vpack.c.bf16 %v756, %v752
        %v815 = vpack.c.bf16 %v758, %v754
        %v816 = vpack.c.bf16 %v766, %v762
        %v817 = vpack.c.bf16 %v768, %v764
        %v818 = vpack.c.bf16 %v776, %v772
        %v819 = vpack.c.bf16 %v778, %v774
        %v820 = vpack.c.bf16 %v786, %v782
        %v821 = vpack.c.bf16 %v788, %v784
        %v822 = vpack.c.bf16 %v796, %v792
        %v823 = vpack.c.bf16 %v798, %v794
        %v824 = vpack.c.bf16 %v806, %v802
        %v825 = vpack.c.bf16 %v808, %v804
        %v826 = vld [vmem:[%s3] sm:$0x3]
        %v828 = vlaneseq
        %v829 = vshrl.u32 %v828, 7
        %v830 = vsub.s32 0, %v829
        %v831 = vrot.slane %v826, %v830
        %v832 = vlaneseq
        %v833 = vshrl.u32 %v832, 7
        %v834 = vsub.s32 1, %v833
        %v835 = vrot.slane %v826, %v834
        %v854 = vunpack.c.l.b16 %v393
        %v855 = vunpack.c.l.b16 %v394
        %v856 = vunpack.c.l.b16 %v395
        %v857 = vunpack.c.l.b16 %v396
        %v858 = vunpack.c.l.b16 %v397
        %v859 = vunpack.c.l.b16 %v398
        %v860 = vunpack.c.l.b16 %v399
        %v861 = vunpack.c.l.b16 %v400
        %v862 = vunpack.c.l.b16 %v401
        %v863 = vunpack.c.l.b16 %v402
        %v864 = vunpack.c.l.b16 %v403
        %v865 = vunpack.c.l.b16 %v404
        %v866 = vunpack.c.l.b16 %v405
        %v867 = vunpack.c.l.b16 %v406
        %v868 = vunpack.c.l.b16 %v407
        %v869 = vunpack.c.l.b16 %v408
        %v870 = vpack.c.b16 %v855, %v854
        %v871 = vpack.c.b16 %v857, %v856
        %v872 = vpack.c.b16 %v859, %v858
        %v873 = vpack.c.b16 %v861, %v860
        %v874 = vpack.c.b16 %v863, %v862
        %v875 = vpack.c.b16 %v865, %v864
        %v876 = vpack.c.b16 %v867, %v866
        %v877 = vpack.c.b16 %v869, %v868
        %886 = vmatprep.subr.bf16.mxu0 %v811
        %887 = vmatpush1.bf16.msra.mxu0 %v810
        %888 = vmatprep.subr.bf16.mxu0 %v813
        %889 = vmatpush1.bf16.msra.mxu0 %v812
        %890 = vmatprep.subr.bf16.mxu0 %v815
        %891 = vmatpush1.bf16.msra.mxu0 %v814
        %892 = vmatprep.subr.bf16.mxu0 %v817
        %893 = vmatpush1.bf16.msra.mxu0 %v816
        %894 = vmatprep.subr.bf16.mxu0 %v819
        %895 = vmatpush1.bf16.msra.mxu0 %v818
        %896 = vmatprep.subr.bf16.mxu0 %v821
        %897 = vmatpush1.bf16.msra.mxu0 %v820
        %898 = vmatprep.subr.bf16.mxu0 %v823
        %899 = vmatpush1.bf16.msra.mxu0 %v822
        %900 = vmatprep.subr.bf16.mxu0 %v825
        %901 = vmatpush1.bf16.msra.mxu0 %v824
        %902 = vmatprep.subr.bf16.mxu0 0
        %903 = vmatpush1.bf16.msra.mxu0 0
        %904 = vmatprep.subr.bf16.mxu0 0
        %905 = vmatpush1.bf16.msra.mxu0 0
        %906 = vmatprep.subr.bf16.mxu0 0
        %907 = vmatpush1.bf16.msra.mxu0 0
        %908 = vmatprep.subr.bf16.mxu0 0
        %909 = vmatpush1.bf16.msra.mxu0 0
        %910 = vmatprep.subr.bf16.mxu0 0
        %911 = vmatpush1.bf16.msra.mxu0 0
        %912 = vmatprep.subr.bf16.mxu0 0
        %913 = vmatpush1.bf16.msra.mxu0 0
        %914 = vmatprep.subr.bf16.mxu0 0
        %915 = vmatpush1.bf16.msra.mxu0 0
        %916 = vmatprep.subr.bf16.mxu0 0
        %917 = vmatpush1.bf16.msra.mxu0 0
        %918 = vmatprep.mubr.bf16.mxu0 0
        %919 = vmatmul.mubr.bf16.gmra.mrb[0].mxu0 %v870
        %v920 = vpop.f32.mrb[0].mxu0
        %v921 = vadd.f32 %v831, %v920
        %v922 = vpop.f32.mrb[0].mxu0
        %v923 = vadd.f32 %v835, %v922
        %v924 = vpop.f32.mrb[0].mxu0
        %v925 = vadd.f32 %v831, %v924
        %v926 = vpop.f32.mrb[0].mxu0
        %v927 = vadd.f32 %v835, %v926
        %928 = vmatprep.mubr.bf16.mxu0 0
        %929 = vmatmul.mubr.bf16.gmra.mrb[0].mxu0 %v871
        %v930 = vpop.f32.mrb[0].mxu0
        %v931 = vadd.f32 %v831, %v930
        %v932 = vpop.f32.mrb[0].mxu0
        %v933 = vadd.f32 %v835, %v932
        %v934 = vpop.f32.mrb[0].mxu0
        %v935 = vadd.f32 %v831, %v934
        %v936 = vpop.f32.mrb[0].mxu0
        %v937 = vadd.f32 %v835, %v936
        %938 = vmatprep.mubr.bf16.mxu0 0
        %939 = vmatmul.mubr.bf16.gmra.mrb[0].mxu0 %v872
        %v940 = vpop.f32.mrb[0].mxu0
        %v941 = vadd.f32 %v831, %v940
        %v942 = vpop.f32.mrb[0].mxu0
        %v943 = vadd.f32 %v835, %v942
        %v944 = vpop.f32.mrb[0].mxu0
        %v945 = vadd.f32 %v831, %v944
        %v946 = vpop.f32.mrb[0].mxu0
        %v947 = vadd.f32 %v835, %v946
        %948 = vmatprep.mubr.bf16.mxu0 0
        %949 = vmatmul.mubr.bf16.gmra.mrb[0].mxu0 %v873
        %v950 = vpop.f32.mrb[0].mxu0
        %v951 = vadd.f32 %v831, %v950
        %v952 = vpop.f32.mrb[0].mxu0
        %v953 = vadd.f32 %v835, %v952
        %v954 = vpop.f32.mrb[0].mxu0
        %v955 = vadd.f32 %v831, %v954
        %v956 = vpop.f32.mrb[0].mxu0
        %v957 = vadd.f32 %v835, %v956
        %958 = vmatprep.mubr.bf16.mxu0 0
        %959 = vmatmul.mubr.bf16.gmra.mrb[0].mxu0 %v874
        %v960 = vpop.f32.mrb[0].mxu0
        %v961 = vadd.f32 %v831, %v960
        %v962 = vpop.f32.mrb[0].mxu0
        %v963 = vadd.f32 %v835, %v962
        %v964 = vpop.f32.mrb[0].mxu0
        %v965 = vadd.f32 %v831, %v964
        %v966 = vpop.f32.mrb[0].mxu0
        %v967 = vadd.f32 %v835, %v966
        %968 = vmatprep.mubr.bf16.mxu0 0
        %969 = vmatmul.mubr.bf16.gmra.mrb[0].mxu0 %v875
        %v970 = vpop.f32.mrb[0].mxu0
        %v971 = vadd.f32 %v831, %v970
        %v972 = vpop.f32.mrb[0].mxu0
        %v973 = vadd.f32 %v835, %v972
        %v974 = vpop.f32.mrb[0].mxu0
        %v975 = vadd.f32 %v831, %v974
        %v976 = vpop.f32.mrb[0].mxu0
        %v977 = vadd.f32 %v835, %v976
        %978 = vmatprep.mubr.bf16.mxu0 0
        %979 = vmatmul.mubr.bf16.gmra.mrb[0].mxu0 %v876
        %v980 = vpop.f32.mrb[0].mxu0
        %v981 = vadd.f32 %v831, %v980
        %v982 = vpop.f32.mrb[0].mxu0
        %v983 = vadd.f32 %v835, %v982
        %v984 = vpop.f32.mrb[0].mxu0
        %v985 = vadd.f32 %v831, %v984
        %v986 = vpop.f32.mrb[0].mxu0
        %v987 = vadd.f32 %v835, %v986
        %988 = vmatprep.mubr.bf16.mxu0 0
        %989 = vmatmul.mubr.bf16.gmra.mrb[0].mxu0 %v877
        %v990 = vpop.f32.mrb[0].mxu0
        %v991 = vadd.f32 %v831, %v990
        %v992 = vpop.f32.mrb[0].mxu0
        %v993 = vadd.f32 %v835, %v992
        %v994 = vpop.f32.mrb[0].mxu0
        %v995 = vadd.f32 %v831, %v994
        %v996 = vpop.f32.mrb[0].mxu0
        %v997 = vadd.f32 %v835, %v996
        %998 = vdwg.mxu0
        %v999 = vmax.f32 %v921, 0.0
        %v1000 = vmax.f32 %v923, 0.0
        %v1001 = vmax.f32 %v925, 0.0
        %v1002 = vmax.f32 %v927, 0.0
        %v1003 = vmax.f32 %v931, 0.0
        %v1004 = vmax.f32 %v933, 0.0
        %v1005 = vmax.f32 %v935, 0.0
        %v1006 = vmax.f32 %v937, 0.0
        %v1007 = vmax.f32 %v941, 0.0
        %v1008 = vmax.f32 %v943, 0.0
        %v1009 = vmax.f32 %v945, 0.0
        %v1010 = vmax.f32 %v947, 0.0
        %v1011 = vmax.f32 %v951, 0.0
        %v1012 = vmax.f32 %v953, 0.0
        %v1013 = vmax.f32 %v955, 0.0
        %v1014 = vmax.f32 %v957, 0.0
        %v1015 = vmax.f32 %v961, 0.0
        %v1016 = vmax.f32 %v963, 0.0
        %v1017 = vmax.f32 %v965, 0.0
        %v1018 = vmax.f32 %v967, 0.0
        %v1019 = vmax.f32 %v971, 0.0
        %v1020 = vmax.f32 %v973, 0.0
        %v1021 = vmax.f32 %v975, 0.0
        %v1022 = vmax.f32 %v977, 0.0
        %v1023 = vmax.f32 %v981, 0.0
        %v1024 = vmax.f32 %v983, 0.0
        %v1025 = vmax.f32 %v985, 0.0
        %v1026 = vmax.f32 %v987, 0.0
        %v1027 = vmax.f32 %v991, 0.0
        %v1028 = vmax.f32 %v993, 0.0
        %v1029 = vmax.f32 %v995, 0.0
        %v1030 = vmax.f32 %v997, 0.0
        %v1031 = vpack.c.bf16 %v1001, %v999
        %v1032 = vpack.c.bf16 %v1002, %v1000
        %v1033 = vpack.c.bf16 %v1005, %v1003
        %v1034 = vpack.c.bf16 %v1006, %v1004
        %v1035 = vpack.c.bf16 %v1009, %v1007
        %v1036 = vpack.c.bf16 %v1010, %v1008
        %v1037 = vpack.c.bf16 %v1013, %v1011
        %v1038 = vpack.c.bf16 %v1014, %v1012
        %v1039 = vpack.c.bf16 %v1017, %v1015
        %v1040 = vpack.c.bf16 %v1018, %v1016
        %v1041 = vpack.c.bf16 %v1021, %v1019
        %v1042 = vpack.c.bf16 %v1022, %v1020
        %v1043 = vpack.c.bf16 %v1025, %v1023
        %v1044 = vpack.c.bf16 %v1026, %v1024
        %v1045 = vpack.c.bf16 %v1029, %v1027
        %v1046 = vpack.c.bf16 %v1030, %v1028
        %v1047 = vld [vmem:[#allocation8] sm:$0xff]
        %v1048 = vld [vmem:[#allocation8 + $0x8] sm:$0xff]
        %v1049 = vld [vmem:[#allocation8 + $0x10] sm:$0xff]
        %v1050 = vld [vmem:[#allocation8 + $0x18] sm:$0xff]
        %v1051 = vld [vmem:[#allocation8 + $0x20] sm:$0xff]
        %v1052 = vld [vmem:[#allocation8 + $0x28] sm:$0xff]
        %v1053 = vld [vmem:[#allocation8 + $0x30] sm:$0xff]
        %v1054 = vld [vmem:[#allocation8 + $0x38] sm:$0xff]
        %v1055 = vld [vmem:[#allocation8 + $0x40] sm:$0xff]
        %v1056 = vld [vmem:[#allocation8 + $0x48] sm:$0xff]
        %v1057 = vld [vmem:[#allocation8 + $0x50] sm:$0xff]
        %v1058 = vld [vmem:[#allocation8 + $0x58] sm:$0xff]
        %v1059 = vld [vmem:[#allocation8 + $0x60] sm:$0xff]
        %v1060 = vld [vmem:[#allocation8 + $0x68] sm:$0xff]
        %v1061 = vld [vmem:[#allocation8 + $0x70] sm:$0xff]
        %v1062 = vld [vmem:[#allocation8 + $0x78] sm:$0xff]
        %v1063 = vld [vmem:[#allocation8 + $0x80] sm:$0xff]
        %v1064 = vld [vmem:[#allocation8 + $0x88] sm:$0xff]
        %v1065 = vld [vmem:[#allocation8 + $0x90] sm:$0xff]
        %v1066 = vld [vmem:[#allocation8 + $0x98] sm:$0xff]
        %v1067 = vld [vmem:[#allocation8 + $0xa0] sm:$0xff]
        %v1068 = vld [vmem:[#allocation8 + $0xa8] sm:$0xff]
        %v1069 = vld [vmem:[#allocation8 + $0xb0] sm:$0xff]
        %v1070 = vld [vmem:[#allocation8 + $0xb8] sm:$0xff]
        %v1071 = vld [vmem:[#allocation8 + $0xc0] sm:$0xff]
        %v1072 = vld [vmem:[#allocation8 + $0xc8] sm:$0xff]
        %v1073 = vld [vmem:[#allocation8 + $0xd0] sm:$0xff]
        %v1074 = vld [vmem:[#allocation8 + $0xd8] sm:$0xff]
        %v1075 = vld [vmem:[#allocation8 + $0xe0] sm:$0xff]
        %v1076 = vld [vmem:[#allocation8 + $0xe8] sm:$0xff]
        %v1077 = vld [vmem:[#allocation8 + $0xf0] sm:$0xff]
        %v1078 = vld [vmem:[#allocation8 + $0xf8] sm:$0xff]
        %v1111 = vunpack.c.l.b16 %v1047
        %v1112 = vunpack.c.h.b16 %v1047
        %v1113 = vunpack.c.l.b16 %v1048
        %v1114 = vunpack.c.h.b16 %v1048
        %v1115 = vunpack.c.l.b16 %v1049
        %v1116 = vunpack.c.h.b16 %v1049
        %v1117 = vunpack.c.l.b16 %v1050
        %v1118 = vunpack.c.h.b16 %v1050
        %v1119 = vunpack.c.l.b16 %v1051
        %v1120 = vunpack.c.h.b16 %v1051
        %v1121 = vunpack.c.l.b16 %v1052
        %v1122 = vunpack.c.h.b16 %v1052
        %v1123 = vunpack.c.l.b16 %v1053
        %v1124 = vunpack.c.h.b16 %v1053
        %v1125 = vunpack.c.l.b16 %v1054
        %v1126 = vunpack.c.h.b16 %v1054
        %v1127 = vunpack.c.l.b16 %v1055
        %v1128 = vunpack.c.h.b16 %v1055
        %v1129 = vunpack.c.l.b16 %v1056
        %v1130 = vunpack.c.h.b16 %v1056
        %v1131 = vunpack.c.l.b16 %v1057
        %v1132 = vunpack.c.h.b16 %v1057
        %v1133 = vunpack.c.l.b16 %v1058
        %v1134 = vunpack.c.h.b16 %v1058
        %v1135 = vunpack.c.l.b16 %v1059
        %v1136 = vunpack.c.h.b16 %v1059
        %v1137 = vunpack.c.l.b16 %v1060
        %v1138 = vunpack.c.h.b16 %v1060
        %v1139 = vunpack.c.l.b16 %v1061
        %v1140 = vunpack.c.h.b16 %v1061
        %v1141 = vunpack.c.l.b16 %v1062
        %v1142 = vunpack.c.h.b16 %v1062
        %v1143 = vunpack.c.l.b16 %v1063
        %v1144 = vunpack.c.h.b16 %v1063
        %v1145 = vunpack.c.l.b16 %v1064
        %v1146 = vunpack.c.h.b16 %v1064
        %v1147 = vunpack.c.l.b16 %v1065
        %v1148 = vunpack.c.h.b16 %v1065
        %v1149 = vunpack.c.l.b16 %v1066
        %v1150 = vunpack.c.h.b16 %v1066
        %v1151 = vunpack.c.l.b16 %v1067
        %v1152 = vunpack.c.h.b16 %v1067
        %v1153 = vunpack.c.l.b16 %v1068
        %v1154 = vunpack.c.h.b16 %v1068
        %v1155 = vunpack.c.l.b16 %v1069
        %v1156 = vunpack.c.h.b16 %v1069
        %v1157 = vunpack.c.l.b16 %v1070
        %v1158 = vunpack.c.h.b16 %v1070
        %v1159 = vunpack.c.l.b16 %v1071
        %v1160 = vunpack.c.h.b16 %v1071
        %v1161 = vunpack.c.l.b16 %v1072
        %v1162 = vunpack.c.h.b16 %v1072
        %v1163 = vunpack.c.l.b16 %v1073
        %v1164 = vunpack.c.h.b16 %v1073
        %v1165 = vunpack.c.l.b16 %v1074
        %v1166 = vunpack.c.h.b16 %v1074
        %v1167 = vunpack.c.l.b16 %v1075
        %v1168 = vunpack.c.h.b16 %v1075
        %v1169 = vunpack.c.l.b16 %v1076
        %v1170 = vunpack.c.h.b16 %v1076
        %v1171 = vunpack.c.l.b16 %v1077
        %v1172 = vunpack.c.h.b16 %v1077
        %v1173 = vunpack.c.l.b16 %v1078
        %v1174 = vunpack.c.h.b16 %v1078
        %v1175 = vpack.c.b16 %v1113, %v1111
        %v1176 = vpack.c.b16 %v1114, %v1112
        %v1177 = vpack.c.b16 %v1117, %v1115
        %v1178 = vpack.c.b16 %v1118, %v1116
        %v1179 = vpack.c.b16 %v1121, %v1119
        %v1180 = vpack.c.b16 %v1122, %v1120
        %v1181 = vpack.c.b16 %v1125, %v1123
        %v1182 = vpack.c.b16 %v1126, %v1124
        %v1183 = vpack.c.b16 %v1129, %v1127
        %v1184 = vpack.c.b16 %v1130, %v1128
        %v1185 = vpack.c.b16 %v1133, %v1131
        %v1186 = vpack.c.b16 %v1134, %v1132
        %v1187 = vpack.c.b16 %v1137, %v1135
        %v1188 = vpack.c.b16 %v1138, %v1136
        %v1189 = vpack.c.b16 %v1141, %v1139
        %v1190 = vpack.c.b16 %v1142, %v1140
        %v1191 = vpack.c.b16 %v1145, %v1143
        %v1192 = vpack.c.b16 %v1146, %v1144
        %v1193 = vpack.c.b16 %v1149, %v1147
        %v1194 = vpack.c.b16 %v1150, %v1148
        %v1195 = vpack.c.b16 %v1153, %v1151
        %v1196 = vpack.c.b16 %v1154, %v1152
        %v1197 = vpack.c.b16 %v1157, %v1155
        %v1198 = vpack.c.b16 %v1158, %v1156
        %v1199 = vpack.c.b16 %v1161, %v1159
        %v1200 = vpack.c.b16 %v1162, %v1160
        %v1201 = vpack.c.b16 %v1165, %v1163
        %v1202 = vpack.c.b16 %v1166, %v1164
        %v1203 = vpack.c.b16 %v1169, %v1167
        %v1204 = vpack.c.b16 %v1170, %v1168
        %v1205 = vpack.c.b16 %v1173, %v1171
        %v1206 = vpack.c.b16 %v1174, %v1172
        %1239 = vmatprep.subr.bf16.mxu0 %v1176
        %1240 = vmatpush1.bf16.msra.mxu0 %v1175
        %1241 = vmatprep.subr.bf16.mxu0 %v1178
        %1242 = vmatpush1.bf16.msra.mxu0 %v1177
        %1243 = vmatprep.subr.bf16.mxu0 %v1180
        %1244 = vmatpush1.bf16.msra.mxu0 %v1179
        %1245 = vmatprep.subr.bf16.mxu0 %v1182
        %1246 = vmatpush1.bf16.msra.mxu0 %v1181
        %1247 = vmatprep.subr.bf16.mxu0 %v1184
        %1248 = vmatpush1.bf16.msra.mxu0 %v1183
        %1249 = vmatprep.subr.bf16.mxu0 %v1186
        %1250 = vmatpush1.bf16.msra.mxu0 %v1185
        %1251 = vmatprep.subr.bf16.mxu0 %v1188
        %1252 = vmatpush1.bf16.msra.mxu0 %v1187
        %1253 = vmatprep.subr.bf16.mxu0 %v1190
        %1254 = vmatpush1.bf16.msra.mxu0 %v1189
        %1255 = vmatprep.subr.bf16.mxu0 %v1192
        %1256 = vmatpush1.bf16.msra.mxu0 %v1191
        %1257 = vmatprep.subr.bf16.mxu0 %v1194
        %1258 = vmatpush1.bf16.msra.mxu0 %v1193
        %1259 = vmatprep.subr.bf16.mxu0 %v1196
        %1260 = vmatpush1.bf16.msra.mxu0 %v1195
        %1261 = vmatprep.subr.bf16.mxu0 %v1198
        %1262 = vmatpush1.bf16.msra.mxu0 %v1197
        %1263 = vmatprep.subr.bf16.mxu0 %v1200
        %1264 = vmatpush1.bf16.msra.mxu0 %v1199
        %1265 = vmatprep.subr.bf16.mxu0 %v1202
        %1266 = vmatpush1.bf16.msra.mxu0 %v1201
        %1267 = vmatprep.subr.bf16.mxu0 %v1204
        %1268 = vmatpush1.bf16.msra.mxu0 %v1203
        %1269 = vmatprep.subr.bf16.mxu0 %v1206
        %1270 = vmatpush1.bf16.msra.mxu0 %v1205
        %1271 = vmatprep.mubr.bf16.mxu0 %v1032
        %1272 = vmatmul.mubr.bf16.gmra.mrb[0].mxu0 %v1031
        %v1273 = vpop.f32.mrb[0].mxu0
        %v1274 = vadd.f32 0.0, %v1273
        %v1275 = vpop.f32.mrb[0].mxu0
        %v1276 = vadd.f32 0.0, %v1275
        %v1277 = vpop.f32.mrb[0].mxu0
        %v1278 = vadd.f32 0.0, %v1277
        %v1279 = vpop.f32.mrb[0].mxu0
        %v1280 = vadd.f32 0.0, %v1279
        %1281 = vmatprep.mubr.bf16.mxu0 %v1034
        %1282 = vmatmul.mubr.bf16.gmra.mrb[0].mxu0 %v1033
        %v1283 = vpop.f32.mrb[0].mxu0
        %v1284 = vadd.f32 0.0, %v1283
        %v1285 = vpop.f32.mrb[0].mxu0
        %v1286 = vadd.f32 0.0, %v1285
        %v1287 = vpop.f32.mrb[0].mxu0
        %v1288 = vadd.f32 0.0, %v1287
        %v1289 = vpop.f32.mrb[0].mxu0
        %v1290 = vadd.f32 0.0, %v1289
        %1291 = vmatprep.mubr.bf16.mxu0 %v1036
        %1292 = vmatmul.mubr.bf16.gmra.mrb[0].mxu0 %v1035
        %v1293 = vpop.f32.mrb[0].mxu0
        %v1294 = vadd.f32 0.0, %v1293
        %v1295 = vpop.f32.mrb[0].mxu0
        %v1296 = vadd.f32 0.0, %v1295
        %v1297 = vpop.f32.mrb[0].mxu0
        %v1298 = vadd.f32 0.0, %v1297
        %v1299 = vpop.f32.mrb[0].mxu0
        %v1300 = vadd.f32 0.0, %v1299
        %1301 = vmatprep.mubr.bf16.mxu0 %v1038
        %1302 = vmatmul.mubr.bf16.gmra.mrb[0].mxu0 %v1037
        %v1303 = vpop.f32.mrb[0].mxu0
        %v1304 = vadd.f32 0.0, %v1303
        %v1305 = vpop.f32.mrb[0].mxu0
        %v1306 = vadd.f32 0.0, %v1305
        %v1307 = vpop.f32.mrb[0].mxu0
        %v1308 = vadd.f32 0.0, %v1307
        %v1309 = vpop.f32.mrb[0].mxu0
        %v1310 = vadd.f32 0.0, %v1309
        %1311 = vmatprep.mubr.bf16.mxu0 %v1040
        %1312 = vmatmul.mubr.bf16.gmra.mrb[0].mxu0 %v1039
        %v1313 = vpop.f32.mrb[0].mxu0
        %v1314 = vadd.f32 0.0, %v1313
        %v1315 = vpop.f32.mrb[0].mxu0
        %v1316 = vadd.f32 0.0, %v1315
        %v1317 = vpop.f32.mrb[0].mxu0
        %v1318 = vadd.f32 0.0, %v1317
        %v1319 = vpop.f32.mrb[0].mxu0
        %v1320 = vadd.f32 0.0, %v1319
        %1321 = vmatprep.mubr.bf16.mxu0 %v1042
        %1322 = vmatmul.mubr.bf16.gmra.mrb[0].mxu0 %v1041
        %v1323 = vpop.f32.mrb[0].mxu0
        %v1324 = vadd.f32 0.0, %v1323
        %v1325 = vpop.f32.mrb[0].mxu0
        %v1326 = vadd.f32 0.0, %v1325
        %v1327 = vpop.f32.mrb[0].mxu0
        %v1328 = vadd.f32 0.0, %v1327
        %v1329 = vpop.f32.mrb[0].mxu0
        %v1330 = vadd.f32 0.0, %v1329
        %1331 = vmatprep.mubr.bf16.mxu0 %v1044
        %1332 = vmatmul.mubr.bf16.gmra.mrb[0].mxu0 %v1043
        %v1333 = vpop.f32.mrb[0].mxu0
        %v1334 = vadd.f32 0.0, %v1333
        %v1335 = vpop.f32.mrb[0].mxu0
        %v1336 = vadd.f32 0.0, %v1335
        %v1337 = vpop.f32.mrb[0].mxu0
        %v1338 = vadd.f32 0.0, %v1337
        %v1339 = vpop.f32.mrb[0].mxu0
        %v1340 = vadd.f32 0.0, %v1339
        %1341 = vmatprep.mubr.bf16.mxu0 %v1046
        %1342 = vmatmul.mubr.bf16.gmra.mrb[0].mxu0 %v1045
        %v1343 = vpop.f32.mrb[0].mxu0
        %v1344 = vadd.f32 0.0, %v1343
        %v1345 = vpop.f32.mrb[0].mxu0
        %v1346 = vadd.f32 0.0, %v1345
        %v1347 = vpop.f32.mrb[0].mxu0
        %v1348 = vadd.f32 0.0, %v1347
        %v1349 = vpop.f32.mrb[0].mxu0
        %v1350 = vadd.f32 0.0, %v1349
        %1351 = vdwg.mxu0
        %v1352 = vpack.c.bf16 %v1278, %v1274
        %v1353 = vpack.c.bf16 %v1280, %v1276
        %v1354 = vpack.c.bf16 %v1288, %v1284
        %v1355 = vpack.c.bf16 %v1290, %v1286
        %v1356 = vpack.c.bf16 %v1298, %v1294
        %v1357 = vpack.c.bf16 %v1300, %v1296
        %v1358 = vpack.c.bf16 %v1308, %v1304
        %v1359 = vpack.c.bf16 %v1310, %v1306
        %v1360 = vpack.c.bf16 %v1318, %v1314
        %v1361 = vpack.c.bf16 %v1320, %v1316
        %v1362 = vpack.c.bf16 %v1328, %v1324
        %v1363 = vpack.c.bf16 %v1330, %v1326
        %v1364 = vpack.c.bf16 %v1338, %v1334
        %v1365 = vpack.c.bf16 %v1340, %v1336
        %v1366 = vpack.c.bf16 %v1348, %v1344
        %v1367 = vpack.c.bf16 %v1350, %v1346
        %v1368 = vld [vmem:[%s5] sm:$0x3]
        %v1370 = vlaneseq
        %v1371 = vshrl.u32 %v1370, 7
        %v1372 = vsub.s32 0, %v1371
        %v1373 = vrot.slane %v1368, %v1372
        %v1374 = vlaneseq
        %v1375 = vshrl.u32 %v1374, 7
        %v1376 = vsub.s32 1, %v1375
        %v1377 = vrot.slane %v1368, %v1376
        %1380 = vmatprep.subr.bf16.mxu0 %v1353
        %1381 = vmatpush1.bf16.msra.mxu0 %v1352
        %1382 = vmatprep.subr.bf16.mxu0 %v1355
        %1383 = vmatpush1.bf16.msra.mxu0 %v1354
        %1384 = vmatprep.subr.bf16.mxu0 %v1357
        %1385 = vmatpush1.bf16.msra.mxu0 %v1356
        %1386 = vmatprep.subr.bf16.mxu0 %v1359
        %1387 = vmatpush1.bf16.msra.mxu0 %v1358
        %1388 = vmatprep.subr.bf16.mxu0 %v1361
        %1389 = vmatpush1.bf16.msra.mxu0 %v1360
        %1390 = vmatprep.subr.bf16.mxu0 %v1363
        %1391 = vmatpush1.bf16.msra.mxu0 %v1362
        %1392 = vmatprep.subr.bf16.mxu0 %v1365
        %1393 = vmatpush1.bf16.msra.mxu0 %v1364
        %1394 = vmatprep.subr.bf16.mxu0 %v1367
        %1395 = vmatpush1.bf16.msra.mxu0 %v1366
        %1396 = vmatprep.subr.bf16.mxu0 0
        %1397 = vmatpush1.bf16.msra.mxu0 0
        %1398 = vmatprep.subr.bf16.mxu0 0
        %1399 = vmatpush1.bf16.msra.mxu0 0
        %1400 = vmatprep.subr.bf16.mxu0 0
        %1401 = vmatpush1.bf16.msra.mxu0 0
        %1402 = vmatprep.subr.bf16.mxu0 0
        %1403 = vmatpush1.bf16.msra.mxu0 0
        %1404 = vmatprep.subr.bf16.mxu0 0
        %1405 = vmatpush1.bf16.msra.mxu0 0
        %1406 = vmatprep.subr.bf16.mxu0 0
        %1407 = vmatpush1.bf16.msra.mxu0 0
        %1408 = vmatprep.subr.bf16.mxu0 0
        %1409 = vmatpush1.bf16.msra.mxu0 0
        %1410 = vmatprep.subr.bf16.mxu0 0
        %1411 = vmatpush1.bf16.msra.mxu0 0
        %1412 = vmatprep.mubr.bf16.mxu0 0
        %1413 = vmatmul.mubr.bf16.gmra.mrb[0].mxu0 %v870
        %v1414 = vpop.f32.mrb[0].mxu0
        %v1415 = vadd.f32 %v1373, %v1414
        %v1416 = vpop.f32.mrb[0].mxu0
        %v1417 = vadd.f32 %v1377, %v1416
        %v1418 = vpop.f32.mrb[0].mxu0
        %v1419 = vadd.f32 %v1373, %v1418
        %v1420 = vpop.f32.mrb[0].mxu0
        %v1421 = vadd.f32 %v1377, %v1420
        %1422 = vmatprep.mubr.bf16.mxu0 0
        %1423 = vmatmul.mubr.bf16.gmra.mrb[0].mxu0 %v871
        %v1424 = vpop.f32.mrb[0].mxu0
        %v1425 = vadd.f32 %v1373, %v1424
        %v1426 = vpop.f32.mrb[0].mxu0
        %v1427 = vadd.f32 %v1377, %v1426
        %v1428 = vpop.f32.mrb[0].mxu0
        %v1429 = vadd.f32 %v1373, %v1428
        %v1430 = vpop.f32.mrb[0].mxu0
        %v1431 = vadd.f32 %v1377, %v1430
        %1432 = vmatprep.mubr.bf16.mxu0 0
        %1433 = vmatmul.mubr.bf16.gmra.mrb[0].mxu0 %v872
        %v1434 = vpop.f32.mrb[0].mxu0
        %v1435 = vadd.f32 %v1373, %v1434
        %v1436 = vpop.f32.mrb[0].mxu0
        %v1437 = vadd.f32 %v1377, %v1436
        %v1438 = vpop.f32.mrb[0].mxu0
        %v1439 = vadd.f32 %v1373, %v1438
        %v1440 = vpop.f32.mrb[0].mxu0
        %v1441 = vadd.f32 %v1377, %v1440
        %1442 = vmatprep.mubr.bf16.mxu0 0
        %1443 = vmatmul.mubr.bf16.gmra.mrb[0].mxu0 %v873
        %v1444 = vpop.f32.mrb[0].mxu0
        %v1445 = vadd.f32 %v1373, %v1444
        %v1446 = vpop.f32.mrb[0].mxu0
        %v1447 = vadd.f32 %v1377, %v1446
        %v1448 = vpop.f32.mrb[0].mxu0
        %v1449 = vadd.f32 %v1373, %v1448
        %v1450 = vpop.f32.mrb[0].mxu0
        %v1451 = vadd.f32 %v1377, %v1450
        %1452 = vmatprep.mubr.bf16.mxu0 0
        %1453 = vmatmul.mubr.bf16.gmra.mrb[0].mxu0 %v874
        %v1454 = vpop.f32.mrb[0].mxu0
        %v1455 = vadd.f32 %v1373, %v1454
        %v1456 = vpop.f32.mrb[0].mxu0
        %v1457 = vadd.f32 %v1377, %v1456
        %v1458 = vpop.f32.mrb[0].mxu0
        %v1459 = vadd.f32 %v1373, %v1458
        %v1460 = vpop.f32.mrb[0].mxu0
        %v1461 = vadd.f32 %v1377, %v1460
        %1462 = vmatprep.mubr.bf16.mxu0 0
        %1463 = vmatmul.mubr.bf16.gmra.mrb[0].mxu0 %v875
        %v1464 = vpop.f32.mrb[0].mxu0
        %v1465 = vadd.f32 %v1373, %v1464
        %v1466 = vpop.f32.mrb[0].mxu0
        %v1467 = vadd.f32 %v1377, %v1466
        %v1468 = vpop.f32.mrb[0].mxu0
        %v1469 = vadd.f32 %v1373, %v1468
        %v1470 = vpop.f32.mrb[0].mxu0
        %v1471 = vadd.f32 %v1377, %v1470
        %1472 = vmatprep.mubr.bf16.mxu0 0
        %1473 = vmatmul.mubr.bf16.gmra.mrb[0].mxu0 %v876
        %v1474 = vpop.f32.mrb[0].mxu0
        %v1475 = vadd.f32 %v1373, %v1474
        %v1476 = vpop.f32.mrb[0].mxu0
        %v1477 = vadd.f32 %v1377, %v1476
        %v1478 = vpop.f32.mrb[0].mxu0
        %v1479 = vadd.f32 %v1373, %v1478
        %v1480 = vpop.f32.mrb[0].mxu0
        %v1481 = vadd.f32 %v1377, %v1480
        %1482 = vmatprep.mubr.bf16.mxu0 0
        %1483 = vmatmul.mubr.bf16.gmra.mrb[0].mxu0 %v877
        %v1484 = vpop.f32.mrb[0].mxu0
        %v1485 = vadd.f32 %v1373, %v1484
        %v1486 = vpop.f32.mrb[0].mxu0
        %v1487 = vadd.f32 %v1377, %v1486
        %v1488 = vpop.f32.mrb[0].mxu0
        %v1489 = vadd.f32 %v1373, %v1488
        %v1490 = vpop.f32.mrb[0].mxu0
        %v1491 = vadd.f32 %v1377, %v1490
        %1492 = vdwg.mxu0
        %v1493 = vmax.f32 %v1415, 0.0
        %v1494 = vmax.f32 %v1417, 0.0
        %v1495 = vmax.f32 %v1419, 0.0
        %v1496 = vmax.f32 %v1421, 0.0
        %v1497 = vmax.f32 %v1425, 0.0
        %v1498 = vmax.f32 %v1427, 0.0
        %v1499 = vmax.f32 %v1429, 0.0
        %v1500 = vmax.f32 %v1431, 0.0
        %v1501 = vmax.f32 %v1435, 0.0
        %v1502 = vmax.f32 %v1437, 0.0
        %v1503 = vmax.f32 %v1439, 0.0
        %v1504 = vmax.f32 %v1441, 0.0
        %v1505 = vmax.f32 %v1445, 0.0
        %v1506 = vmax.f32 %v1447, 0.0
        %v1507 = vmax.f32 %v1449, 0.0
        %v1508 = vmax.f32 %v1451, 0.0
        %v1509 = vmax.f32 %v1455, 0.0
        %v1510 = vmax.f32 %v1457, 0.0
        %v1511 = vmax.f32 %v1459, 0.0
        %v1512 = vmax.f32 %v1461, 0.0
        %v1513 = vmax.f32 %v1465, 0.0
        %v1514 = vmax.f32 %v1467, 0.0
        %v1515 = vmax.f32 %v1469, 0.0
        %v1516 = vmax.f32 %v1471, 0.0
        %v1517 = vmax.f32 %v1475, 0.0
        %v1518 = vmax.f32 %v1477, 0.0
        %v1519 = vmax.f32 %v1479, 0.0
        %v1520 = vmax.f32 %v1481, 0.0
        %v1521 = vmax.f32 %v1485, 0.0
        %v1522 = vmax.f32 %v1487, 0.0
        %v1523 = vmax.f32 %v1489, 0.0
        %v1524 = vmax.f32 %v1491, 0.0
        %v1525 = vadd.f32 %v1493, %v1495
        %v1526 = vadd.f32 %v1525, %v1497
        %v1527 = vadd.f32 %v1526, %v1499
        %v1528 = vadd.f32 %v1527, %v1501
        %v1529 = vadd.f32 %v1528, %v1503
        %v1530 = vadd.f32 %v1529, %v1505
        %v1531 = vadd.f32 %v1530, %v1507
        %v1532 = vadd.f32 %v1531, %v1509
        %v1533 = vadd.f32 %v1532, %v1511
        %v1534 = vadd.f32 %v1533, %v1513
        %v1535 = vadd.f32 %v1534, %v1515
        %v1536 = vadd.f32 %v1535, %v1517
        %v1537 = vadd.f32 %v1536, %v1519
        %v1538 = vadd.f32 %v1537, %v1521
        %v1539 = vadd.f32 %v1538, %v1523
        %v1540 = vrot.slane %v1539, 4
        %v1541 = vadd.f32 %v1539, %v1540
        %v1542 = vrot.slane %v1541, 2
        %v1543 = vadd.f32 %v1541, %v1542
        %v1544 = vrot.slane %v1543, 1
        %v1545 = vadd.f32 %v1543, %v1544
        %v1546 = vadd.f32 %v1494, %v1496
        %v1547 = vadd.f32 %v1546, %v1498
        %v1548 = vadd.f32 %v1547, %v1500
        %v1549 = vadd.f32 %v1548, %v1502
        %v1550 = vadd.f32 %v1549, %v1504
        %v1551 = vadd.f32 %v1550, %v1506
        %v1552 = vadd.f32 %v1551, %v1508
        %v1553 = vadd.f32 %v1552, %v1510
        %v1554 = vadd.f32 %v1553, %v1512
        %v1555 = vadd.f32 %v1554, %v1514
        %v1556 = vadd.f32 %v1555, %v1516
        %v1557 = vadd.f32 %v1556, %v1518
        %v1558 = vadd.f32 %v1557, %v1520
        %v1559 = vadd.f32 %v1558, %v1522
        %v1560 = vadd.f32 %v1559, %v1524
        %v1561 = vrot.slane %v1560, 4
        %v1562 = vadd.f32 %v1560, %v1561
        %v1563 = vrot.slane %v1562, 2
        %v1564 = vadd.f32 %v1562, %v1563
        %v1565 = vrot.slane %v1564, 1
        %v1566 = vadd.f32 %v1564, %v1565
        %v1567 = vrcp.pop 128.0
        %v1568 = vmul.f32 %v1545, %v1567
        %v1569 = vmul.f32 %v1566, %v1567
        %v1570 = vpack.c.bf16 %v1568, %v1568
        %v1571 = vpack.c.bf16 %v1569, %v1569
        %v1572 = vld [vmem:[%s6] sm:$0xf]
        %v1573 = vld [vmem:[%s6 + $0x4] sm:$0xf]
        %v1574 = vld [vmem:[%s6 + $0x8] sm:$0xf]
        %v1575 = vld [vmem:[%s6 + $0xc] sm:$0xf]
        %v1576 = vld [vmem:[%s6 + $0x10] sm:$0xf]
        %v1577 = vld [vmem:[%s6 + $0x14] sm:$0xf]
        %v1578 = vld [vmem:[%s6 + $0x18] sm:$0xf]
        %v1579 = vld [vmem:[%s6 + $0x1c] sm:$0xf]
        %v1580 = vld [vmem:[%s6 + $0x20] sm:$0xf]
        %v1581 = vld [vmem:[%s6 + $0x24] sm:$0xf]
        %v1582 = vld [vmem:[%s6 + $0x28] sm:$0xf]
        %v1583 = vld [vmem:[%s6 + $0x2c] sm:$0xf]
        %v1584 = vld [vmem:[%s6 + $0x30] sm:$0xf]
        %v1585 = vld [vmem:[%s6 + $0x34] sm:$0xf]
        %v1586 = vld [vmem:[%s6 + $0x38] sm:$0xf]
        %v1587 = vld [vmem:[%s6 + $0x3c] sm:$0xf]
        %v1588 = vld [vmem:[%s6 + $0x40] sm:$0xf]
        %v1589 = vld [vmem:[%s6 + $0x44] sm:$0xf]
        %v1590 = vld [vmem:[%s6 + $0x48] sm:$0xf]
        %v1591 = vld [vmem:[%s6 + $0x4c] sm:$0xf]
        %v1592 = vld [vmem:[%s6 + $0x50] sm:$0xf]
        %v1593 = vld [vmem:[%s6 + $0x54] sm:$0xf]
        %v1594 = vld [vmem:[%s6 + $0x58] sm:$0xf]
        %v1595 = vld [vmem:[%s6 + $0x5c] sm:$0xf]
        %v1596 = vld [vmem:[%s6 + $0x60] sm:$0xf]
        %v1597 = vld [vmem:[%s6 + $0x64] sm:$0xf]
        %v1598 = vld [vmem:[%s6 + $0x68] sm:$0xf]
        %v1599 = vld [vmem:[%s6 + $0x6c] sm:$0xf]
        %v1600 = vld [vmem:[%s6 + $0x70] sm:$0xf]
        %v1601 = vld [vmem:[%s6 + $0x74] sm:$0xf]
        %v1602 = vld [vmem:[%s6 + $0x78] sm:$0xf]
        %v1603 = vld [vmem:[%s6 + $0x7c] sm:$0xf]
        %v1604 = vld [vmem:[%s7] sm:$0x1]
        %v1637 = vunpack.c.l.b16 %v1572
        %v1638 = vunpack.c.l.b16 %v1573
        %v1639 = vunpack.c.l.b16 %v1574
        %v1640 = vunpack.c.l.b16 %v1575
        %v1641 = vunpack.c.l.b16 %v1576
        %v1642 = vunpack.c.l.b16 %v1577
        %v1643 = vunpack.c.l.b16 %v1578
        %v1644 = vunpack.c.l.b16 %v1579
        %v1645 = vunpack.c.l.b16 %v1580
        %v1646 = vunpack.c.l.b16 %v1581
        %v1647 = vunpack.c.l.b16 %v1582
        %v1648 = vunpack.c.l.b16 %v1583
        %v1649 = vunpack.c.l.b16 %v1584
        %v1650 = vunpack.c.l.b16 %v1585
        %v1651 = vunpack.c.l.b16 %v1586
        %v1652 = vunpack.c.l.b16 %v1587
        %v1653 = vunpack.c.l.b16 %v1588
        %v1654 = vunpack.c.l.b16 %v1589
        %v1655 = vunpack.c.l.b16 %v1590
        %v1656 = vunpack.c.l.b16 %v1591
        %v1657 = vunpack.c.l.b16 %v1592
        %v1658 = vunpack.c.l.b16 %v1593
        %v1659 = vunpack.c.l.b16 %v1594
        %v1660 = vunpack.c.l.b16 %v1595
        %v1661 = vunpack.c.l.b16 %v1596
        %v1662 = vunpack.c.l.b16 %v1597
        %v1663 = vunpack.c.l.b16 %v1598
        %v1664 = vunpack.c.l.b16 %v1599
        %v1665 = vunpack.c.l.b16 %v1600
        %v1666 = vunpack.c.l.b16 %v1601
        %v1667 = vunpack.c.l.b16 %v1602
        %v1668 = vunpack.c.l.b16 %v1603
        %v1669 = vpack.c.b16 %v1638, %v1637
        %v1670 = vpack.c.b16 %v1640, %v1639
        %v1671 = vpack.c.b16 %v1642, %v1641
        %v1672 = vpack.c.b16 %v1644, %v1643
        %v1673 = vpack.c.b16 %v1646, %v1645
        %v1674 = vpack.c.b16 %v1648, %v1647
        %v1675 = vpack.c.b16 %v1650, %v1649
        %v1676 = vpack.c.b16 %v1652, %v1651
        %v1677 = vpack.c.b16 %v1654, %v1653
        %v1678 = vpack.c.b16 %v1656, %v1655
        %v1679 = vpack.c.b16 %v1658, %v1657
        %v1680 = vpack.c.b16 %v1660, %v1659
        %v1681 = vpack.c.b16 %v1662, %v1661
        %v1682 = vpack.c.b16 %v1664, %v1663
        %v1683 = vpack.c.b16 %v1666, %v1665
        %v1684 = vpack.c.b16 %v1668, %v1667
        %1701 = vmatprep.subr.bf16.mxu0 0
        %1702 = vmatpush1.bf16.msra.mxu0 %v1669
        %1703 = vmatprep.subr.bf16.mxu0 0
        %1704 = vmatpush1.bf16.msra.mxu0 %v1670
        %1705 = vmatprep.subr.bf16.mxu0 0
        %1706 = vmatpush1.bf16.msra.mxu0 %v1671
        %1707 = vmatprep.subr.bf16.mxu0 0
        %1708 = vmatpush1.bf16.msra.mxu0 %v1672
        %1709 = vmatprep.subr.bf16.mxu0 0
        %1710 = vmatpush1.bf16.msra.mxu0 %v1673
        %1711 = vmatprep.subr.bf16.mxu0 0
        %1712 = vmatpush1.bf16.msra.mxu0 %v1674
        %1713 = vmatprep.subr.bf16.mxu0 0
        %1714 = vmatpush1.bf16.msra.mxu0 %v1675
        %1715 = vmatprep.subr.bf16.mxu0 0
        %1716 = vmatpush1.bf16.msra.mxu0 %v1676
        %1717 = vmatprep.subr.bf16.mxu0 0
        %1718 = vmatpush1.bf16.msra.mxu0 %v1677
        %1719 = vmatprep.subr.bf16.mxu0 0
        %1720 = vmatpush1.bf16.msra.mxu0 %v1678
        %1721 = vmatprep.subr.bf16.mxu0 0
        %1722 = vmatpush1.bf16.msra.mxu0 %v1679
        %1723 = vmatprep.subr.bf16.mxu0 0
        %1724 = vmatpush1.bf16.msra.mxu0 %v1680
        %1725 = vmatprep.subr.bf16.mxu0 0
        %1726 = vmatpush1.bf16.msra.mxu0 %v1681
        %1727 = vmatprep.subr.bf16.mxu0 0
        %1728 = vmatpush1.bf16.msra.mxu0 %v1682
        %1729 = vmatprep.subr.bf16.mxu0 0
        %1730 = vmatpush1.bf16.msra.mxu0 %v1683
        %1731 = vmatprep.subr.bf16.mxu0 0
        %1732 = vmatpush1.bf16.msra.mxu0 %v1684
        %1733 = vmatprep.mubr.bf16.mxu0 %v1571
        %1734 = vmatmul.mubr.bf16.gmra.mrb[0].mxu0 %v1570
        %v1735 = vpop.f32.mrb[0].mxu0
        %v1736 = vadd.f32 %v1604, %v1735
        %v1737 = vpop.f32.mrb[0].mxu0
        %v1738 = vpop.f32.mrb[0].mxu0
        %v1739 = vpop.f32.mrb[0].mxu0
        %1740 = vdwg.mxu0
        %vm1741 = vcmask 139264
        %1742 = vst.msk [vmem:[%s391] sm:$0x1] %vm1741, %v1736
        %s1743 = sand.u32 %s215, 1
        %s1744 = scalar_lea.sflag [#allocation4], %s1743
        %s1745 = sand.u32 %s215, 1
        %s1746 = scalar_lea.vmem [#allocation10], %s1745
        // Predicated region
        $region69: #{tpu_custom_call.1} parent=51 // pred_check
          %p1747 = pneg %p225
        $region70: #{tpu_custom_call.1} parent=51 // pred_check_branch
          %1749 = sbr.rel (%p1747) target = $region72
        $region71: #{tpu_custom_call.1} parent=51 // pred_region
          %s1751 = ssub.s32 16, 16
          %1752 = vsyncadd %s1744, %s1751
          %s1753 = smul.addr %s29, 16
          %s1754 = scalar_lea.hbm %s8, %s1753
          %s1756 = sshll.u32 %s1746, 4
          %s1757 = int_to_ptr.vmem [resolvable:$true] %s1756
          %1759 = dma.vmem_to_hbm [thread:$0]  %s1757, 16, %s1754, %s1744
        $region72: #{tpu_custom_call.1} parent=51 // pred_fallthru
          _
      $region52: #{tpu_custom_call.1} parent=5 // pred_fallthru
        _
      %p1760 = scmp.le.s32.totalorder 2, %s24
      // Predicated region
      $region73: #{tpu_custom_call.1} parent=5 // pred_check
        %p1761 = pneg %p1760
      $region74: #{tpu_custom_call.1} parent=5 // pred_check_branch
        %1763 = sbr.rel (%p1761) target = $region76
      $region75: #{tpu_custom_call.1} parent=5 // pred_region
        %s1764 = ssub.s32 %s24, 2
        // Predicated region
        $region77: #{tpu_custom_call.1} parent=75 // pred_check
          %p1765 = pneg %p231
        $region78: #{tpu_custom_call.1} parent=75 // pred_check_branch
          %1767 = sbr.rel (%p1765) target = $region80
        $region79: #{tpu_custom_call.1} parent=75 // pred_region
          %s1768 = sand.u32 %s216, 1
          %s1769 = scalar_lea.sflag [#allocation4], %s1768
          %s1770 = sand.u32 %s216, 1
          %s1771 = scalar_lea.vmem [#allocation10], %s1770
          %1772 = dma.done %s1769, 16
        $region80: #{tpu_custom_call.1} parent=75 // pred_fallthru
          _
      $region76: #{tpu_custom_call.1} parent=5 // pred_fallthru
        _
    $region6: #{tpu_custom_call.1} parent=1 // loop_footer
      %s28 = sadd.s32 1, %s24
    $region7: #{tpu_custom_call.1} parent=1 // loop_footer_branch
      %23 = sbr.rel target = $region3
    $region8: #{tpu_custom_call.1} parent=1 // loop_exit
      _
    %1773 = vsyncpa [#allocation3], 1
    %s1774 = scalar_lea.sflag [#allocation3], 1
    %1775 = vsyncpa %s1774, 1
    %1776 = vsyncpa [#allocation6], 1
    %s1777 = scalar_lea.sflag [#allocation6], 1
    %1778 = vsyncpa %s1777, 1
    %1779 = vsyncpa [#allocation9], 1
    %1780 = vsyncpa [#allocation4], 1
    %s1781 = scalar_lea.sflag [#allocation4], 1
    %1782 = vsyncpa %s1781, 1

</llo_original>
